<compile_context>
chip_gen: v7x
topology: tpu7x:2x2x1
jax: 0.10.0
libtpu: 0.0.40
codegen_flags: <defaults>
</compile_context>

<pallas_src>
from functools import partial

import jax
import jax.numpy as jnp
from jax import lax
from jax.experimental import pallas as pl
from jax.experimental.pallas import tpu as pltpu


def _round_up(x, n):
    return (x + n - 1) // n * n


def conv_block_kernel(x_ref, w_ref, b_ref, o_ref, xcol_ref, *,
                      ksize, cin_p, hpwp, wp, m_pad, k, k_pad):
    """One (batch, depth-tile) grid step.

    x_ref   : (cin_p, slab_len_p)   halo'd, flattened, zero-padded depth slab
    w_ref   : (Cout, k_pad)         taps flattened (kd,kh,kw,cin)-major, zero-padded
    b_ref   : (Cout, 1)             conv bias
    o_ref   : (Cout, m_pad)         lane-dense output tile (padded (h,w) grid)
    xcol_ref: (k_pad, m_pad)        transposed im2col scratch (m on the lane axis)
    """
    KD, KH, KW = ksize

    # Zero the K-padding rows (uninitialized VMEM * zero weight could be NaN).
    if k_pad > k:
        xcol_ref[pl.ds(k, k_pad - k), :] = jnp.zeros((k_pad - k, m_pad), x_ref.dtype)

    # Transposed im2col: tap (kd,kh,kw) of the flattened padded volume is a
    # contiguous lane slice at a *static* offset kd*Hp*Wp + kh*Wp + kw; each
    # tap writes cin_p full-lane rows at an 8-aligned sublane offset.
    row = 0
    for kd in range(KD):
        for kh in range(KH):
            for kw in range(KW):
                delta = kd * hpwp + kh * wp + kw
                xcol_ref[pl.ds(row, cin_p), :] = x_ref[:, pl.ds(delta, m_pad)]
                row += cin_p

    # Single MXU contraction in its natural orientation: (Cout, K) . (K, m).
    acc = lax.dot_general(
        w_ref[...], xcol_ref[...],
        dimension_numbers=(((1,), (0,)), ((), ())),
        preferred_element_type=jnp.float32)              # (Cout, m_pad) f32
    acc = acc + b_ref[...]                               # bias broadcast (f32 epilogue)
    acc = jnp.maximum(acc, 0.0)                          # ReLU
    o_ref[...] = acc.astype(o_ref.dtype)


def _pick_depth_tile(do, hpwp, *, max_lanes=4096, min_lanes=256):
    """Pick td | Do so the lane tile m = td*Hp*Wp is large (amortize ~0.35us/step
    + MXU fill/drain) but VMEM-bounded, preferring >= 2 depth tiles when that
    still leaves a reasonably large tile (keeps the pipeline busy)."""
    cands = [td for td in range(1, do + 1)
             if do % td == 0 and td * hpwp <= max_lanes]
    if not cands:
        # TODO(synk): huge-H*W volumes need an additional H tile; out of scope.
        return 1
    multi = [td for td in cands if td < do and td * hpwp >= min_lanes]
    if multi:
        return max(multi)
    return max(cands)


@partial(jax.jit, static_argnames=("stride", "padding"))
def conv_block_forward(x_ncdhw, w_oidhw, bias, *, stride=1, padding=1):
    """ConvBlock forward: ConstantPad3d(padding, 0) -> Conv3d(bias) -> ReLU."""
    if stride != 1:
        # TODO(synk): stride>1 needs a subsampled flattening; not implemented.
        raise NotImplementedError("Pallas ConvBlock kernel implements stride=1 only.")
    N, Cin, D, H, W = x_ncdhw.shape
    Cout, Cin_w, KD, KH, KW = w_oidhw.shape
    assert Cin == Cin_w

    p = padding
    Dp, Hp, Wp = D + 2 * p, H + 2 * p, W + 2 * p
    Do, Ho, Wo = Dp - KD + 1, Hp - KH + 1, Wp - KW + 1
    hpwp = Hp * Wp

    cin_p = _round_up(Cin, 8)            # sublane-aligned tap stripes
    k = KD * KH * KW * cin_p
    k_pad = _round_up(k, 128)            # MXU-friendly contraction width

    td = _pick_depth_tile(Do, hpwp)
    n_dt = Do // td
    m = td * hpwp                        # logical lane tile (padded (h,w) grid)
    m_pad = _round_up(m, 128)            # lane-dense blocks; tail cols discarded

    max_delta = (KD - 1) * hpwp + (KH - 1) * Wp + (KW - 1)
    slab_len_p = _round_up(m_pad + max_delta, 128)
    flat_len = (n_dt - 1) * m + slab_len_p
    dp_ext = -(-flat_len // hpwp)        # depth planes needed to cover all slabs

    # One fused zero-pad pass (channels -> cin_p, spatial pad, extra tail depth
    # planes only ever read by discarded padded-grid positions).  Channels-first
    # is kept, so no transpose and Cin never sits on the lane dim.
    xp = jnp.pad(x_ncdhw, ((0, 0), (0, cin_p - Cin),
                           (p, p + (dp_ext - Dp)), (p, p), (p, p)))
    xf = xp.reshape(N, cin_p, dp_ext * hpwp)            # metadata-only flatten

    # Halo'd depth slabs: slab t covers output depth planes [t*td, (t+1)*td).
    # BlockSpec pipelining double-buffers one slab at a time -> VMEM is O(slab).
    # TODO(synk): manual rolling-buffer DMA would avoid this (KD-1)/td HBM dup.
    x_slabs = jnp.stack(
        [xf[:, :, t * m: t * m + slab_len_p] for t in range(n_dt)],
        axis=1)                                          # (N, n_dt, cin_p, slab_len_p)

    # Weights: OIDHW -> (Cout, KD, KH, KW, cin_p) -> (Cout, k) -> zero-pad to k_pad.
    w_t = jnp.transpose(w_oidhw, (0, 2, 3, 4, 1))
    w_t = jnp.pad(w_t, ((0, 0), (0, 0), (0, 0), (0, 0), (0, cin_p - Cin)))
    w2 = jnp.pad(w_t.reshape(Cout, k),
                 ((0, 0), (0, k_pad - k))).astype(x_ncdhw.dtype)
    b2 = bias.reshape(Cout, 1).astype(x_ncdhw.dtype)

    bytes_el = x_ncdhw.dtype.itemsize
    cost = pl.CostEstimate(
        flops=2 * N * Do * Ho * Wo * Cout * KD * KH * KW * Cin,
        transcendentals=0,
        bytes_accessed=(x_slabs.size + w2.size + b2.size
                        + N * Cout * n_dt * m_pad) * bytes_el)

    out_flat = pl.pallas_call(
        partial(conv_block_kernel, ksize=(KD, KH, KW), cin_p=cin_p,
                hpwp=hpwp, wp=Wp, m_pad=m_pad, k=k, k_pad=k_pad),
        out_shape=jax.ShapeDtypeStruct((N, Cout, n_dt * m_pad), x_ncdhw.dtype),
        grid=(N, n_dt),
        in_specs=[
            # One halo'd slab per (n, t) step; auto double-buffered.
            pl.BlockSpec((None, None, cin_p, slab_len_p), lambda n, t: (n, t, 0, 0)),
            # Tiny resident weights / bias (constant block index -> no re-DMA).
            pl.BlockSpec((Cout, k_pad), lambda n, t: (0, 0)),
            pl.BlockSpec((Cout, 1), lambda n, t: (0, 0)),
        ],
        out_specs=pl.BlockSpec((None, Cout, m_pad), lambda n, t: (n, 0, t)),
        scratch_shapes=[pltpu.VMEM((k_pad, m_pad), x_ncdhw.dtype)],
        compiler_params=pltpu.CompilerParams(
            dimension_semantics=("parallel", "parallel"),
            vmem_limit_bytes=40 * 1024 * 1024),
        cost_estimate=cost,
    )(x_slabs, w2, b2)

    # Drop the per-tile lane padding and the padded-(h,w)-grid columns
    # (fusible slice; no extra transpose pass).
    y = out_flat.reshape(N, Cout, n_dt, m_pad)[:, :, :, :m]
    y = y.reshape(N, Cout, Do, Hp, Wp)[:, :, :, :Ho, :Wo]
    return y


def reference_forward(x_ncdhw, w_oidhw, bias, *, stride=1, padding=1):
    y = lax.conv_general_dilated(
        x_ncdhw, w_oidhw,
        window_strides=(stride, stride, stride),
        padding=[(padding, padding)] * 3,
        dimension_numbers=('NCDHW', 'OIDHW', 'NCDHW'))
    y = y + bias.reshape(1, -1, 1, 1, 1)
    return jnp.maximum(y, 0.0)


if __name__ == "__main__":
    # Small shapes consistent with ConvBlock(in=4, out=8, kernel=3, padding=1, dims=3).
    N, Cin, Cout = 2, 4, 8
    D = H = W = 8
    K = 3

    key = jax.random.PRNGKey(0)
    kx, kw, kb = jax.random.split(key, 3)
    x = jax.random.normal(kx, (N, Cin, D, H, W), jnp.float32)

    # Deterministic parameter init (PyTorch-like uniform scale 1/sqrt(fan_in)).
    fan_in = Cin * K * K * K
    bound = 1.0 / jnp.sqrt(jnp.float32(fan_in))
    w = jax.random.uniform(kw, (Cout, Cin, K, K, K), jnp.float32, -bound, bound)
    b = jax.random.uniform(kb, (Cout,), jnp.float32, -bound, bound)

    out = conv_block_forward(x, w, b, stride=1, padding=1)
    out = jax.block_until_ready(out)

    ref = reference_forward(x, w, b, stride=1, padding=1)
    assert out.shape == ref.shape == (N, Cout, D, H, W)
    assert jnp.allclose(out, ref, atol=1e-4, rtol=1e-4), \
        float(jnp.max(jnp.abs(out - ref)))

    print("KERNEL_OK")
</pallas_src>

<mosaic_0001>
module attributes {stable_mosaic.version = 11 : i64} {
  func.func @conv_block_kernel(%arg0: i32, %arg1: i32, %arg2: memref<1x1x8x768xf32, #tpu.memory_space<vmem>>, %arg3: memref<8x256xf32, #tpu.memory_space<vmem>>, %arg4: memref<8x1xf32, #tpu.memory_space<vmem>>, %arg5: memref<1x8x512xf32, #tpu.memory_space<vmem>>, %arg6: memref<256x512xf32, #tpu.memory_space<vmem>>) attributes {dimension_semantics = [#tpu.dimension_semantics<parallel>, #tpu.dimension_semantics<parallel>], iteration_bounds = array<i64: 2, 2>, scalar_prefetch = 0 : i64, scratch_operands = 1 : i64, tpu.core_type = #tpu.core_type<tc>, window_params = [{transform_indices = @transform_0, window_bounds = array<i64: 1, 1, 8, 768>}, {pipeline_mode = #tpu.pipeline_mode<synchronous>, transform_indices = @transform_1, window_bounds = array<i64: 8, 256>}, {pipeline_mode = #tpu.pipeline_mode<synchronous>, transform_indices = @transform_2, window_bounds = array<i64: 8, 1>}, {transform_indices = @transform_3, window_bounds = array<i64: 1, 8, 512>}]} {
    %cst = arith.constant 0.000000e+00 : f32
    %0 = vector.broadcast %cst : f32 to vector<40x512xf32>
    %c216 = arith.constant 216 : index
    %c0 = arith.constant 0 : index
    %1 = vector.load %arg6[%c216, %c0] : memref<256x512xf32, #tpu.memory_space<vmem>>, vector<40x512xf32>
    tpu.vector_store %arg6[%c216, %c0], %0 {strides = array<i32>} : memref<256x512xf32, #tpu.memory_space<vmem>>, vector<40x512xf32>,
    %c0_0 = arith.constant 0 : index
    %c0_1 = arith.constant 0 : index
    %c0_2 = arith.constant 0 : index
    %c0_3 = arith.constant 0 : index
    %2 = vector.load %arg2[%c0_0, %c0_1, %c0_2, %c0_3] : memref<1x1x8x768xf32, #tpu.memory_space<vmem>>, vector<1x1x8x512xf32>
    %3 = vector.shape_cast %2 : vector<1x1x8x512xf32> to vector<8x512xf32>
    %c0_4 = arith.constant 0 : index
    %c0_5 = arith.constant 0 : index
    %4 = vector.load %arg6[%c0_4, %c0_5] : memref<256x512xf32, #tpu.memory_space<vmem>>, vector<8x512xf32>
    tpu.vector_store %arg6[%c0_4, %c0_5], %3 {strides = array<i32>} : memref<256x512xf32, #tpu.memory_space<vmem>>, vector<8x512xf32>,
    %c0_6 = arith.constant 0 : index
    %c0_7 = arith.constant 0 : index
    %c0_8 = arith.constant 0 : index
    %c1 = arith.constant 1 : index
    %5 = vector.load %arg2[%c0_6, %c0_7, %c0_8, %c1] : memref<1x1x8x768xf32, #tpu.memory_space<vmem>>, vector<1x1x8x512xf32>
    %6 = vector.shape_cast %5 : vector<1x1x8x512xf32> to vector<8x512xf32>
    %c8 = arith.constant 8 : index
    %c0_9 = arith.constant 0 : index
    %7 = vector.load %arg6[%c8, %c0_9] : memref<256x512xf32, #tpu.memory_space<vmem>>, vector<8x512xf32>
    tpu.vector_store %arg6[%c8, %c0_9], %6 {strides = array<i32>} : memref<256x512xf32, #tpu.memory_space<vmem>>, vector<8x512xf32>,
    %c0_10 = arith.constant 0 : index
    %c0_11 = arith.constant 0 : index
    %c0_12 = arith.constant 0 : index
    %c2 = arith.constant 2 : index
    %8 = vector.load %arg2[%c0_10, %c0_11, %c0_12, %c2] : memref<1x1x8x768xf32, #tpu.memory_space<vmem>>, vector<1x1x8x512xf32>
    %9 = vector.shape_cast %8 : vector<1x1x8x512xf32> to vector<8x512xf32>
    %c16 = arith.constant 16 : index
    %c0_13 = arith.constant 0 : index
    %10 = vector.load %arg6[%c16, %c0_13] : memref<256x512xf32, #tpu.memory_space<vmem>>, vector<8x512xf32>
    tpu.vector_store %arg6[%c16, %c0_13], %9 {strides = array<i32>} : memref<256x512xf32, #tpu.memory_space<vmem>>, vector<8x512xf32>,
    %c0_14 = arith.constant 0 : index
    %c0_15 = arith.constant 0 : index
    %c0_16 = arith.constant 0 : index
    %c10 = arith.constant 10 : index
    %11 = vector.load %arg2[%c0_14, %c0_15, %c0_16, %c10] : memref<1x1x8x768xf32, #tpu.memory_space<vmem>>, vector<1x1x8x512xf32>
    %12 = vector.shape_cast %11 : vector<1x1x8x512xf32> to vector<8x512xf32>
    %c24 = arith.constant 24 : index
    %c0_17 = arith.constant 0 : index
    %13 = vector.load %arg6[%c24, %c0_17] : memref<256x512xf32, #tpu.memory_space<vmem>>, vector<8x512xf32>
    tpu.vector_store %arg6[%c24, %c0_17], %12 {strides = array<i32>} : memref<256x512xf32, #tpu.memory_space<vmem>>, vector<8x512xf32>,
    %c0_18 = arith.constant 0 : index
    %c0_19 = arith.constant 0 : index
    %c0_20 = arith.constant 0 : index
    %c11 = arith.constant 11 : index
    %14 = vector.load %arg2[%c0_18, %c0_19, %c0_20, %c11] : memref<1x1x8x768xf32, #tpu.memory_space<vmem>>, vector<1x1x8x512xf32>
    %15 = vector.shape_cast %14 : vector<1x1x8x512xf32> to vector<8x512xf32>
    %c32 = arith.constant 32 : index
    %c0_21 = arith.constant 0 : index
    %16 = vector.load %arg6[%c32, %c0_21] : memref<256x512xf32, #tpu.memory_space<vmem>>, vector<8x512xf32>
    tpu.vector_store %arg6[%c32, %c0_21], %15 {strides = array<i32>} : memref<256x512xf32, #tpu.memory_space<vmem>>, vector<8x512xf32>,
    %c0_22 = arith.constant 0 : index
    %c0_23 = arith.constant 0 : index
    %c0_24 = arith.constant 0 : index
    %c12 = arith.constant 12 : index
    %17 = vector.load %arg2[%c0_22, %c0_23, %c0_24, %c12] : memref<1x1x8x768xf32, #tpu.memory_space<vmem>>, vector<1x1x8x512xf32>
    %18 = vector.shape_cast %17 : vector<1x1x8x512xf32> to vector<8x512xf32>
    %c40 = arith.constant 40 : index
    %c0_25 = arith.constant 0 : index
    %19 = vector.load %arg6[%c40, %c0_25] : memref<256x512xf32, #tpu.memory_space<vmem>>, vector<8x512xf32>
    tpu.vector_store %arg6[%c40, %c0_25], %18 {strides = array<i32>} : memref<256x512xf32, #tpu.memory_space<vmem>>, vector<8x512xf32>,
    %c0_26 = arith.constant 0 : index
    %c0_27 = arith.constant 0 : index
    %c0_28 = arith.constant 0 : index
    %c20 = arith.constant 20 : index
    %20 = vector.load %arg2[%c0_26, %c0_27, %c0_28, %c20] : memref<1x1x8x768xf32, #tpu.memory_space<vmem>>, vector<1x1x8x512xf32>
    %21 = vector.shape_cast %20 : vector<1x1x8x512xf32> to vector<8x512xf32>
    %c48 = arith.constant 48 : index
    %c0_29 = arith.constant 0 : index
    %22 = vector.load %arg6[%c48, %c0_29] : memref<256x512xf32, #tpu.memory_space<vmem>>, vector<8x512xf32>
    tpu.vector_store %arg6[%c48, %c0_29], %21 {strides = array<i32>} : memref<256x512xf32, #tpu.memory_space<vmem>>, vector<8x512xf32>,
    %c0_30 = arith.constant 0 : index
    %c0_31 = arith.constant 0 : index
    %c0_32 = arith.constant 0 : index
    %c21 = arith.constant 21 : index
    %23 = vector.load %arg2[%c0_30, %c0_31, %c0_32, %c21] : memref<1x1x8x768xf32, #tpu.memory_space<vmem>>, vector<1x1x8x512xf32>
    %24 = vector.shape_cast %23 : vector<1x1x8x512xf32> to vector<8x512xf32>
    %c56 = arith.constant 56 : index
    %c0_33 = arith.constant 0 : index
    %25 = vector.load %arg6[%c56, %c0_33] : memref<256x512xf32, #tpu.memory_space<vmem>>, vector<8x512xf32>
    tpu.vector_store %arg6[%c56, %c0_33], %24 {strides = array<i32>} : memref<256x512xf32, #tpu.memory_space<vmem>>, vector<8x512xf32>,
    %c0_34 = arith.constant 0 : index
    %c0_35 = arith.constant 0 : index
    %c0_36 = arith.constant 0 : index
    %c22 = arith.constant 22 : index
    %26 = vector.load %arg2[%c0_34, %c0_35, %c0_36, %c22] : memref<1x1x8x768xf32, #tpu.memory_space<vmem>>, vector<1x1x8x512xf32>
    %27 = vector.shape_cast %26 : vector<1x1x8x512xf32> to vector<8x512xf32>
    %c64 = arith.constant 64 : index
    %c0_37 = arith.constant 0 : index
    %28 = vector.load %arg6[%c64, %c0_37] : memref<256x512xf32, #tpu.memory_space<vmem>>, vector<8x512xf32>
    tpu.vector_store %arg6[%c64, %c0_37], %27 {strides = array<i32>} : memref<256x512xf32, #tpu.memory_space<vmem>>, vector<8x512xf32>,
    %c0_38 = arith.constant 0 : index
    %c0_39 = arith.constant 0 : index
    %c0_40 = arith.constant 0 : index
    %c100 = arith.constant 100 : index
    %29 = vector.load %arg2[%c0_38, %c0_39, %c0_40, %c100] : memref<1x1x8x768xf32, #tpu.memory_space<vmem>>, vector<1x1x8x512xf32>
    %30 = vector.shape_cast %29 : vector<1x1x8x512xf32> to vector<8x512xf32>
    %c72 = arith.constant 72 : index
    %c0_41 = arith.constant 0 : index
    %31 = vector.load %arg6[%c72, %c0_41] : memref<256x512xf32, #tpu.memory_space<vmem>>, vector<8x512xf32>
    tpu.vector_store %arg6[%c72, %c0_41], %30 {strides = array<i32>} : memref<256x512xf32, #tpu.memory_space<vmem>>, vector<8x512xf32>,
    %c0_42 = arith.constant 0 : index
    %c0_43 = arith.constant 0 : index
    %c0_44 = arith.constant 0 : index
    %c101 = arith.constant 101 : index
    %32 = vector.load %arg2[%c0_42, %c0_43, %c0_44, %c101] : memref<1x1x8x768xf32, #tpu.memory_space<vmem>>, vector<1x1x8x512xf32>
    %33 = vector.shape_cast %32 : vector<1x1x8x512xf32> to vector<8x512xf32>
    %c80 = arith.constant 80 : index
    %c0_45 = arith.constant 0 : index
    %34 = vector.load %arg6[%c80, %c0_45] : memref<256x512xf32, #tpu.memory_space<vmem>>, vector<8x512xf32>
    tpu.vector_store %arg6[%c80, %c0_45], %33 {strides = array<i32>} : memref<256x512xf32, #tpu.memory_space<vmem>>, vector<8x512xf32>,
    %c0_46 = arith.constant 0 : index
    %c0_47 = arith.constant 0 : index
    %c0_48 = arith.constant 0 : index
    %c102 = arith.constant 102 : index
    %35 = vector.load %arg2[%c0_46, %c0_47, %c0_48, %c102] : memref<1x1x8x768xf32, #tpu.memory_space<vmem>>, vector<1x1x8x512xf32>
    %36 = vector.shape_cast %35 : vector<1x1x8x512xf32> to vector<8x512xf32>
    %c88 = arith.constant 88 : index
    %c0_49 = arith.constant 0 : index
    %37 = vector.load %arg6[%c88, %c0_49] : memref<256x512xf32, #tpu.memory_space<vmem>>, vector<8x512xf32>
    tpu.vector_store %arg6[%c88, %c0_49], %36 {strides = array<i32>} : memref<256x512xf32, #tpu.memory_space<vmem>>, vector<8x512xf32>,
    %c0_50 = arith.constant 0 : index
    %c0_51 = arith.constant 0 : index
    %c0_52 = arith.constant 0 : index
    %c110 = arith.constant 110 : index
    %38 = vector.load %arg2[%c0_50, %c0_51, %c0_52, %c110] : memref<1x1x8x768xf32, #tpu.memory_space<vmem>>, vector<1x1x8x512xf32>
    %39 = vector.shape_cast %38 : vector<1x1x8x512xf32> to vector<8x512xf32>
    %c96 = arith.constant 96 : index
    %c0_53 = arith.constant 0 : index
    %40 = vector.load %arg6[%c96, %c0_53] : memref<256x512xf32, #tpu.memory_space<vmem>>, vector<8x512xf32>
    tpu.vector_store %arg6[%c96, %c0_53], %39 {strides = array<i32>} : memref<256x512xf32, #tpu.memory_space<vmem>>, vector<8x512xf32>,
    %c0_54 = arith.constant 0 : index
    %c0_55 = arith.constant 0 : index
    %c0_56 = arith.constant 0 : index
    %c111 = arith.constant 111 : index
    %41 = vector.load %arg2[%c0_54, %c0_55, %c0_56, %c111] : memref<1x1x8x768xf32, #tpu.memory_space<vmem>>, vector<1x1x8x512xf32>
    %42 = vector.shape_cast %41 : vector<1x1x8x512xf32> to vector<8x512xf32>
    %c104 = arith.constant 104 : index
    %c0_57 = arith.constant 0 : index
    %43 = vector.load %arg6[%c104, %c0_57] : memref<256x512xf32, #tpu.memory_space<vmem>>, vector<8x512xf32>
    tpu.vector_store %arg6[%c104, %c0_57], %42 {strides = array<i32>} : memref<256x512xf32, #tpu.memory_space<vmem>>, vector<8x512xf32>,
    %c0_58 = arith.constant 0 : index
    %c0_59 = arith.constant 0 : index
    %c0_60 = arith.constant 0 : index
    %c112 = arith.constant 112 : index
    %44 = vector.load %arg2[%c0_58, %c0_59, %c0_60, %c112] : memref<1x1x8x768xf32, #tpu.memory_space<vmem>>, vector<1x1x8x512xf32>
    %45 = vector.shape_cast %44 : vector<1x1x8x512xf32> to vector<8x512xf32>
    %c112_61 = arith.constant 112 : index
    %c0_62 = arith.constant 0 : index
    %46 = vector.load %arg6[%c112_61, %c0_62] : memref<256x512xf32, #tpu.memory_space<vmem>>, vector<8x512xf32>
    tpu.vector_store %arg6[%c112_61, %c0_62], %45 {strides = array<i32>} : memref<256x512xf32, #tpu.memory_space<vmem>>, vector<8x512xf32>,
    %c0_63 = arith.constant 0 : index
    %c0_64 = arith.constant 0 : index
    %c0_65 = arith.constant 0 : index
    %c120 = arith.constant 120 : index
    %47 = vector.load %arg2[%c0_63, %c0_64, %c0_65, %c120] : memref<1x1x8x768xf32, #tpu.memory_space<vmem>>, vector<1x1x8x512xf32>
    %48 = vector.shape_cast %47 : vector<1x1x8x512xf32> to vector<8x512xf32>
    %c120_66 = arith.constant 120 : index
    %c0_67 = arith.constant 0 : index
    %49 = vector.load %arg6[%c120_66, %c0_67] : memref<256x512xf32, #tpu.memory_space<vmem>>, vector<8x512xf32>
    tpu.vector_store %arg6[%c120_66, %c0_67], %48 {strides = array<i32>} : memref<256x512xf32, #tpu.memory_space<vmem>>, vector<8x512xf32>,
    %c0_68 = arith.constant 0 : index
    %c0_69 = arith.constant 0 : index
    %c0_70 = arith.constant 0 : index
    %c121 = arith.constant 121 : index
    %50 = vector.load %arg2[%c0_68, %c0_69, %c0_70, %c121] : memref<1x1x8x768xf32, #tpu.memory_space<vmem>>, vector<1x1x8x512xf32>
    %51 = vector.shape_cast %50 : vector<1x1x8x512xf32> to vector<8x512xf32>
    %c128 = arith.constant 128 : index
    %c0_71 = arith.constant 0 : index
    %52 = vector.load %arg6[%c128, %c0_71] : memref<256x512xf32, #tpu.memory_space<vmem>>, vector<8x512xf32>
    tpu.vector_store %arg6[%c128, %c0_71], %51 {strides = array<i32>} : memref<256x512xf32, #tpu.memory_space<vmem>>, vector<8x512xf32>,
    %c0_72 = arith.constant 0 : index
    %c0_73 = arith.constant 0 : index
    %c0_74 = arith.constant 0 : index
    %c122 = arith.constant 122 : index
    %53 = vector.load %arg2[%c0_72, %c0_73, %c0_74, %c122] : memref<1x1x8x768xf32, #tpu.memory_space<vmem>>, vector<1x1x8x512xf32>
    %54 = vector.shape_cast %53 : vector<1x1x8x512xf32> to vector<8x512xf32>
    %c136 = arith.constant 136 : index
    %c0_75 = arith.constant 0 : index
    %55 = vector.load %arg6[%c136, %c0_75] : memref<256x512xf32, #tpu.memory_space<vmem>>, vector<8x512xf32>
    tpu.vector_store %arg6[%c136, %c0_75], %54 {strides = array<i32>} : memref<256x512xf32, #tpu.memory_space<vmem>>, vector<8x512xf32>,
    %c0_76 = arith.constant 0 : index
    %c0_77 = arith.constant 0 : index
    %c0_78 = arith.constant 0 : index
    %c200 = arith.constant 200 : index
    %56 = vector.load %arg2[%c0_76, %c0_77, %c0_78, %c200] : memref<1x1x8x768xf32, #tpu.memory_space<vmem>>, vector<1x1x8x512xf32>
    %57 = vector.shape_cast %56 : vector<1x1x8x512xf32> to vector<8x512xf32>
    %c144 = arith.constant 144 : index
    %c0_79 = arith.constant 0 : index
    %58 = vector.load %arg6[%c144, %c0_79] : memref<256x512xf32, #tpu.memory_space<vmem>>, vector<8x512xf32>
    tpu.vector_store %arg6[%c144, %c0_79], %57 {strides = array<i32>} : memref<256x512xf32, #tpu.memory_space<vmem>>, vector<8x512xf32>,
    %c0_80 = arith.constant 0 : index
    %c0_81 = arith.constant 0 : index
    %c0_82 = arith.constant 0 : index
    %c201 = arith.constant 201 : index
    %59 = vector.load %arg2[%c0_80, %c0_81, %c0_82, %c201] : memref<1x1x8x768xf32, #tpu.memory_space<vmem>>, vector<1x1x8x512xf32>
    %60 = vector.shape_cast %59 : vector<1x1x8x512xf32> to vector<8x512xf32>
    %c152 = arith.constant 152 : index
    %c0_83 = arith.constant 0 : index
    %61 = vector.load %arg6[%c152, %c0_83] : memref<256x512xf32, #tpu.memory_space<vmem>>, vector<8x512xf32>
    tpu.vector_store %arg6[%c152, %c0_83], %60 {strides = array<i32>} : memref<256x512xf32, #tpu.memory_space<vmem>>, vector<8x512xf32>,
    %c0_84 = arith.constant 0 : index
    %c0_85 = arith.constant 0 : index
    %c0_86 = arith.constant 0 : index
    %c202 = arith.constant 202 : index
    %62 = vector.load %arg2[%c0_84, %c0_85, %c0_86, %c202] : memref<1x1x8x768xf32, #tpu.memory_space<vmem>>, vector<1x1x8x512xf32>
    %63 = vector.shape_cast %62 : vector<1x1x8x512xf32> to vector<8x512xf32>
    %c160 = arith.constant 160 : index
    %c0_87 = arith.constant 0 : index
    %64 = vector.load %arg6[%c160, %c0_87] : memref<256x512xf32, #tpu.memory_space<vmem>>, vector<8x512xf32>
    tpu.vector_store %arg6[%c160, %c0_87], %63 {strides = array<i32>} : memref<256x512xf32, #tpu.memory_space<vmem>>, vector<8x512xf32>,
    %c0_88 = arith.constant 0 : index
    %c0_89 = arith.constant 0 : index
    %c0_90 = arith.constant 0 : index
    %c210 = arith.constant 210 : index
    %65 = vector.load %arg2[%c0_88, %c0_89, %c0_90, %c210] : memref<1x1x8x768xf32, #tpu.memory_space<vmem>>, vector<1x1x8x512xf32>
    %66 = vector.shape_cast %65 : vector<1x1x8x512xf32> to vector<8x512xf32>
    %c168 = arith.constant 168 : index
    %c0_91 = arith.constant 0 : index
    %67 = vector.load %arg6[%c168, %c0_91] : memref<256x512xf32, #tpu.memory_space<vmem>>, vector<8x512xf32>
    tpu.vector_store %arg6[%c168, %c0_91], %66 {strides = array<i32>} : memref<256x512xf32, #tpu.memory_space<vmem>>, vector<8x512xf32>,
    %c0_92 = arith.constant 0 : index
    %c0_93 = arith.constant 0 : index
    %c0_94 = arith.constant 0 : index
    %c211 = arith.constant 211 : index
    %68 = vector.load %arg2[%c0_92, %c0_93, %c0_94, %c211] : memref<1x1x8x768xf32, #tpu.memory_space<vmem>>, vector<1x1x8x512xf32>
    %69 = vector.shape_cast %68 : vector<1x1x8x512xf32> to vector<8x512xf32>
    %c176 = arith.constant 176 : index
    %c0_95 = arith.constant 0 : index
    %70 = vector.load %arg6[%c176, %c0_95] : memref<256x512xf32, #tpu.memory_space<vmem>>, vector<8x512xf32>
    tpu.vector_store %arg6[%c176, %c0_95], %69 {strides = array<i32>} : memref<256x512xf32, #tpu.memory_space<vmem>>, vector<8x512xf32>,
    %c0_96 = arith.constant 0 : index
    %c0_97 = arith.constant 0 : index
    %c0_98 = arith.constant 0 : index
    %c212 = arith.constant 212 : index
    %71 = vector.load %arg2[%c0_96, %c0_97, %c0_98, %c212] : memref<1x1x8x768xf32, #tpu.memory_space<vmem>>, vector<1x1x8x512xf32>
    %72 = vector.shape_cast %71 : vector<1x1x8x512xf32> to vector<8x512xf32>
    %c184 = arith.constant 184 : index
    %c0_99 = arith.constant 0 : index
    %73 = vector.load %arg6[%c184, %c0_99] : memref<256x512xf32, #tpu.memory_space<vmem>>, vector<8x512xf32>
    tpu.vector_store %arg6[%c184, %c0_99], %72 {strides = array<i32>} : memref<256x512xf32, #tpu.memory_space<vmem>>, vector<8x512xf32>,
    %c0_100 = arith.constant 0 : index
    %c0_101 = arith.constant 0 : index
    %c0_102 = arith.constant 0 : index
    %c220 = arith.constant 220 : index
    %74 = vector.load %arg2[%c0_100, %c0_101, %c0_102, %c220] : memref<1x1x8x768xf32, #tpu.memory_space<vmem>>, vector<1x1x8x512xf32>
    %75 = vector.shape_cast %74 : vector<1x1x8x512xf32> to vector<8x512xf32>
    %c192 = arith.constant 192 : index
    %c0_103 = arith.constant 0 : index
    %76 = vector.load %arg6[%c192, %c0_103] : memref<256x512xf32, #tpu.memory_space<vmem>>, vector<8x512xf32>
    tpu.vector_store %arg6[%c192, %c0_103], %75 {strides = array<i32>} : memref<256x512xf32, #tpu.memory_space<vmem>>, vector<8x512xf32>,
    %c0_104 = arith.constant 0 : index
    %c0_105 = arith.constant 0 : index
    %c0_106 = arith.constant 0 : index
    %c221 = arith.constant 221 : index
    %77 = vector.load %arg2[%c0_104, %c0_105, %c0_106, %c221] : memref<1x1x8x768xf32, #tpu.memory_space<vmem>>, vector<1x1x8x512xf32>
    %78 = vector.shape_cast %77 : vector<1x1x8x512xf32> to vector<8x512xf32>
    %c200_107 = arith.constant 200 : index
    %c0_108 = arith.constant 0 : index
    %79 = vector.load %arg6[%c200_107, %c0_108] : memref<256x512xf32, #tpu.memory_space<vmem>>, vector<8x512xf32>
    tpu.vector_store %arg6[%c200_107, %c0_108], %78 {strides = array<i32>} : memref<256x512xf32, #tpu.memory_space<vmem>>, vector<8x512xf32>,
    %c0_109 = arith.constant 0 : index
    %c0_110 = arith.constant 0 : index
    %c0_111 = arith.constant 0 : index
    %c222 = arith.constant 222 : index
    %80 = vector.load %arg2[%c0_109, %c0_110, %c0_111, %c222] : memref<1x1x8x768xf32, #tpu.memory_space<vmem>>, vector<1x1x8x512xf32>
    %81 = vector.shape_cast %80 : vector<1x1x8x512xf32> to vector<8x512xf32>
    %c208 = arith.constant 208 : index
    %c0_112 = arith.constant 0 : index
    %82 = vector.load %arg6[%c208, %c0_112] : memref<256x512xf32, #tpu.memory_space<vmem>>, vector<8x512xf32>
    tpu.vector_store %arg6[%c208, %c0_112], %81 {strides = array<i32>} : memref<256x512xf32, #tpu.memory_space<vmem>>, vector<8x512xf32>,
    %c0_113 = arith.constant 0 : index
    %c0_114 = arith.constant 0 : index
    %83 = vector.load %arg3[%c0_113, %c0_114] : memref<8x256xf32, #tpu.memory_space<vmem>>, vector<8x256xf32>
    %c0_115 = arith.constant 0 : index
    %c0_116 = arith.constant 0 : index
    %84 = vector.load %arg6[%c0_115, %c0_116] : memref<256x512xf32, #tpu.memory_space<vmem>>, vector<256x512xf32>
    %cst_117 = arith.constant dense<0.000000e+00> : vector<8x512xf32>
    %85 = tpu.matmul %83, %84, %cst_117 {dimension_numbers = #tpu.dot_dimension_numbers<[1], [0], [0], [1], [0, 0, 1, 1], [], []>} : vector<8x256xf32>, vector<256x512xf32>, vector<8x512xf32> -> vector<8x512xf32>
    %c0_118 = arith.constant 0 : index
    %c0_119 = arith.constant 0 : index
    %86 = vector.load %arg4[%c0_118, %c0_119] : memref<8x1xf32, #tpu.memory_space<vmem>>, vector<8x1xf32>
    %87 = vector.broadcast %86 : vector<8x1xf32> to vector<8x512xf32>
    %88 = arith.addf %85, %87 : vector<8x512xf32>
    %cst_120 = arith.constant 0.000000e+00 : f32
    %89 = vector.broadcast %cst_120 : f32 to vector<8x512xf32>
    %90 = arith.maximumf %88, %89 : vector<8x512xf32>
    %c0_121 = arith.constant 0 : index
    %c0_122 = arith.constant 0 : index
    %c0_123 = arith.constant 0 : index
    %91 = vector.load %arg5[%c0_121, %c0_122, %c0_123] : memref<1x8x512xf32, #tpu.memory_space<vmem>>, vector<1x8x512xf32>
    %92 = vector.shape_cast %91 : vector<1x8x512xf32> to vector<8x512xf32>
    %93 = vector.shape_cast %90 : vector<8x512xf32> to vector<1x8x512xf32>
    tpu.vector_store %arg5[%c0_121, %c0_122, %c0_123], %93 {strides = array<i32>} : memref<1x8x512xf32, #tpu.memory_space<vmem>>, vector<1x8x512xf32>,
    return
  }
  func.func @transform_0(%arg0: i32, %arg1: i32) -> (i32, i32, i32, i32) {
    %c0_i32 = arith.constant 0 : i32
    %c0_i32_0 = arith.constant 0 : i32
    %c0_i32_1 = arith.constant 0 : i32
    return %arg0, %arg1, %c0_i32, %c0_i32_0 : i32, i32, i32, i32
  }
  func.func @transform_1(%arg0: i32, %arg1: i32) -> (i32, i32) {
    %c0_i32 = arith.constant 0 : i32
    %c0_i32_0 = arith.constant 0 : i32
    %c0_i32_1 = arith.constant 0 : i32
    return %c0_i32, %c0_i32_0 : i32, i32
  }
  func.func @transform_2(%arg0: i32, %arg1: i32) -> (i32, i32) {
    %c0_i32 = arith.constant 0 : i32
    %c0_i32_0 = arith.constant 0 : i32
    %c0_i32_1 = arith.constant 0 : i32
    return %c0_i32, %c0_i32_0 : i32, i32
  }
  func.func @transform_3(%arg0: i32, %arg1: i32) -> (i32, i32, i32) {
    %c0_i32 = arith.constant 0 : i32
    %c0_i32_0 = arith.constant 0 : i32
    return %arg0, %c0_i32, %arg1 : i32, i32, i32
  }
}

</mosaic_0001>

<llo_original>
// kernel: conv_block_forward.1
$region0: #{conv_block_forward.1}
  #allocation0 [shape = 'u32[]', space=smem, size = 0x4, offset = 0x4, fixed_abs, tag = 'smem constant byte address 0x4 - core index']
  #allocation1 [shape = 'u32[144,128]{1,0:T(1,128)}', space=vmem, size = 0x12000, scoped, tag = 'internal scratch']
  #allocation2 [shape = 'f32[256,512]{1,0:T(8,128)}', space=vmem, size = 0x80000, scoped, tag = 'scratch operand']
  %s0 = inlined_call_operand.vmem [shape: f32[2,2,8,768], index: 0, kind: input, shape index: {}]
  %s1 = inlined_call_operand.vmem [shape: f32[8,256], index: 1, kind: input, shape index: {}]
  %s2 = inlined_call_operand.vmem [shape: f32[8,1], index: 2, kind: input, shape index: {}]
  %s3 = inlined_call_operand.vmem [shape: f32[2,8,1024], index: 3, kind: output, shape index: {}]
  %s4 = sld [smem:[#allocation0]]
  $region45: #{conv_block_forward.1} parent=0
    _
  %s6 = ssub.s32 1, %s4
  %s7 = scalar_select 0, %s6, %s4
  loop: start=0, step=1, limit=6
  $region2: #{conv_block_forward.1} parent=0 // loop_pre_header
    _
  $region3: #{conv_block_forward.1} parent=0 // loop_header
    %s9 = sphi 0, %s13
    %p10 = scmp.ge.s32.totalorder %s9, 6
    %s16 = sphi 0, %s28
    %s17 = sphi 0, %s24
    %s18 = sphi 0, %s16
    %s19 = sphi 0, %s17
    %s20 = sphi 0, %s18
    %s21 = sphi 0, %s19
    %s33 = sphi 0, %s35
    %s36 = sphi 0, %s33
    %s37 = sphi 0, %s36
    %s53 = sphi 0, %s37
    %s57 = sphi 0, %s57
    %s59 = sphi 0, %s57
    %s60 = sphi 0, %s59
    %s74 = sphi 0, %s60
    %s78 = sphi 0, %s78
    %s80 = sphi 0, %s78
    %s81 = sphi 0, %s80
    %s95 = sphi 0, %s81
    %s103 = sphi 0, %s105
    %s106 = sphi 0, %s103
    %s107 = sphi 0, %s106
    %s123 = sphi 0, %s107
  $region4: #{conv_block_forward.1} parent=0 // loop_header_branch
    %12 = sbr.rel (%p10) target = $region8
  $region5: #{conv_block_forward.1} parent=0 // loop_body
    %s14 = ssub.s32 %s9, 1
    %s15 = ssub.s32 %s9, 2
    %s22 = sadd.s32 1, %s17
    %p23 = scmp.ge.s32.totalorder %s22, 2
    %s24 = scalar_select %p23, 0, %s22
    %s25 = sadd.s32 1, %s16
    %s26 = scalar_select %p23, %s25, %s16
    %p27 = scmp.ge.s32.totalorder %s26, 2
    %s28 = scalar_select %p27, 0, %s26
    %s29 = ssub.s32 %s16, %s28
    %s30 = ssub.s32 %s17, %s24
    %s31 = sor.u32 %s29, %s30
    %p32 = scmp.eq.s32.totalorder %s31, 0
    %s34 = sadd.s32 %s33, 1
    %s35 = scalar_select %p32, %s33, %s34
    %p38 = pneg %p32
    %p39 = scmp.eq.s32.totalorder %s9, 3
    %p40 = por %p38, %p39
    %p41 = scmp.ne.s32.totalorder %s33, %s36
    %p42 = scmp.eq.s32.totalorder %s9, 0
    %p43 = por %p41, %p42
    %p44 = scmp.ne.s32.totalorder %s33, %s36
    %p45 = scmp.eq.s32.totalorder %s14, 3
    %p46 = por %p44, %p45
    %p47 = scmp.ne.s32.totalorder %s36, %s37
    %p48 = scmp.eq.s32.totalorder %s14, 0
    %p49 = por %p47, %p48
    %p50 = scmp.ne.s32.totalorder %s36, %s37
    %p51 = scmp.eq.s32.totalorder %s15, 3
    %p52 = por %p50, %p51
    %p54 = scmp.ne.s32.totalorder %s37, %s53
    %p55 = scmp.eq.s32.totalorder %s15, 0
    %p56 = por %p54, %p55
    %s58 = sadd.s32 %s57, 1
    %p61 = scmp.eq.s32.totalorder %s9, 3
    %p62 = scmp.ne.s32.totalorder %s57, %s59
    %p63 = scmp.eq.s32.totalorder %s9, 0
    %p64 = por %p62, %p63
    %p65 = scmp.ne.s32.totalorder %s57, %s59
    %p66 = scmp.eq.s32.totalorder %s14, 3
    %p67 = por %p65, %p66
    %p68 = scmp.ne.s32.totalorder %s59, %s60
    %p69 = scmp.eq.s32.totalorder %s14, 0
    %p70 = por %p68, %p69
    %p71 = scmp.ne.s32.totalorder %s59, %s60
    %p72 = scmp.eq.s32.totalorder %s15, 3
    %p73 = por %p71, %p72
    %p75 = scmp.ne.s32.totalorder %s60, %s74
    %p76 = scmp.eq.s32.totalorder %s15, 0
    %p77 = por %p75, %p76
    %s79 = sadd.s32 %s78, 1
    %p82 = scmp.eq.s32.totalorder %s9, 3
    %p83 = scmp.ne.s32.totalorder %s78, %s80
    %p84 = scmp.eq.s32.totalorder %s9, 0
    %p85 = por %p83, %p84
    %p86 = scmp.ne.s32.totalorder %s78, %s80
    %p87 = scmp.eq.s32.totalorder %s14, 3
    %p88 = por %p86, %p87
    %p89 = scmp.ne.s32.totalorder %s80, %s81
    %p90 = scmp.eq.s32.totalorder %s14, 0
    %p91 = por %p89, %p90
    %p92 = scmp.ne.s32.totalorder %s80, %s81
    %p93 = scmp.eq.s32.totalorder %s15, 3
    %p94 = por %p92, %p93
    %p96 = scmp.ne.s32.totalorder %s81, %s95
    %p97 = scmp.eq.s32.totalorder %s15, 0
    %p98 = por %p96, %p97
    %s99 = ssub.s32 %s16, %s28
    %s100 = ssub.s32 %s17, %s24
    %s101 = sor.u32 %s99, %s100
    %p102 = scmp.eq.s32.totalorder %s101, 0
    %s104 = sadd.s32 %s103, 1
    %s105 = scalar_select %p102, %s103, %s104
    %p108 = pneg %p102
    %p109 = scmp.eq.s32.totalorder %s9, 3
    %p110 = por %p108, %p109
    %p111 = scmp.ne.s32.totalorder %s103, %s106
    %p112 = scmp.eq.s32.totalorder %s9, 0
    %p113 = por %p111, %p112
    %p114 = scmp.ne.s32.totalorder %s103, %s106
    %p115 = scmp.eq.s32.totalorder %s14, 3
    %p116 = por %p114, %p115
    %p117 = scmp.ne.s32.totalorder %s106, %s107
    %p118 = scmp.eq.s32.totalorder %s14, 0
    %p119 = por %p117, %p118
    %p120 = scmp.ne.s32.totalorder %s106, %s107
    %p121 = scmp.eq.s32.totalorder %s15, 3
    %p122 = por %p120, %p121
    %p124 = scmp.ne.s32.totalorder %s107, %s123
    %p125 = scmp.eq.s32.totalorder %s15, 0
    %p126 = por %p124, %p125
    %p127 = scmp.le.s32.totalorder 1, %s9
    %p128 = scmp.lt.s32.totalorder %s9, 5
    %p129 = pnand %p127, %p128
    %p130 = pneg %p129
    // Predicated region
    $region9: #{conv_block_forward.1} parent=5 // pred_check
      _
    $region10: #{conv_block_forward.1} parent=5 // pred_check_branch
      %132 = sbr.rel (%p129) target = $region12
    $region11: #{conv_block_forward.1} parent=5 // pred_region
      %s133 = ssub.s32 %s9, 1
      // Predicated region
      $region13: #{conv_block_forward.1} parent=11 // pred_check
        %p134 = pneg %p70
      $region14: #{conv_block_forward.1} parent=11 // pred_check_branch
        %136 = sbr.rel (%p134) target = $region16
      $region15: #{conv_block_forward.1} parent=11 // pred_region
        _
      $region16: #{conv_block_forward.1} parent=11 // pred_fallthru
        _
      // Predicated region
      $region17: #{conv_block_forward.1} parent=11 // pred_check
        %p137 = pneg %p91
      $region18: #{conv_block_forward.1} parent=11 // pred_check_branch
        %139 = sbr.rel (%p137) target = $region20
      $region19: #{conv_block_forward.1} parent=11 // pred_region
        _
      $region20: #{conv_block_forward.1} parent=11 // pred_fallthru
        _
    $region12: #{conv_block_forward.1} parent=5 // pred_fallthru
      _
    %p140 = scmp.lt.s32.totalorder %s9, 4
    // Predicated region
    $region21: #{conv_block_forward.1} parent=5 // pred_check
      %p141 = pneg %p140
    $region22: #{conv_block_forward.1} parent=5 // pred_check_branch
      %143 = sbr.rel (%p141) target = $region24
    $region23: #{conv_block_forward.1} parent=5 // pred_region
      // Predicated region
      $region25: #{conv_block_forward.1} parent=23 // pred_check
        %p144 = pneg %p43
      $region26: #{conv_block_forward.1} parent=23 // pred_check_branch
        %146 = sbr.rel (%p144) target = $region28
      $region27: #{conv_block_forward.1} parent=23 // pred_region
        %p147 = scmp.lt.s32.totalorder %s16, 1
        %s148 = scalar_select %p147, %s16, 1
        %p149 = scmp.lt.s32.totalorder %s17, 1
        %s150 = scalar_select %p149, %s17, 1
        %s151 = smul.addr %s150, 6
        %s152 = smul.addr %s148, 12
        %s153 = sadd.s32 %s151, %s152
        %s154 = smul.addr %s153, 8
        %s155 = scalar_lea.vmem %s0, %s154
      $region28: #{conv_block_forward.1} parent=23 // pred_fallthru
        _
    $region24: #{conv_block_forward.1} parent=5 // pred_fallthru
      _
    %p156 = scmp.le.s32.totalorder 1, %s9
    %p157 = scmp.lt.s32.totalorder %s9, 5
    %p158 = pnand %p156, %p157
    %p159 = pneg %p158
    // Predicated region
    $region29: #{conv_block_forward.1} parent=5 // pred_check
      _
    $region30: #{conv_block_forward.1} parent=5 // pred_check_branch
      %161 = sbr.rel (%p158) target = $region32
    $region31: #{conv_block_forward.1} parent=5 // pred_region
      %s162 = ssub.s32 %s9, 1
      %p163 = scmp.lt.s32.totalorder %s18, 1
      %s164 = scalar_select %p163, %s18, 1
      %p165 = scmp.lt.s32.totalorder %s19, 1
      %s166 = scalar_select %p165, %s19, 1
      %s167 = smul.addr %s166, 6
      %s168 = smul.addr %s164, 12
      %s169 = sadd.s32 %s167, %s168
      %s170 = smul.addr %s169, 8
      %s171 = scalar_lea.vmem %s0, %s170
      %p172 = pneg %p49
      %p173 = pneg %p46
      %p174 = pneg %p70
      %p175 = pneg %p67
      %p176 = pneg %p91
      %p177 = pneg %p88
      %p178 = pneg %p119
      %p179 = pneg %p116
      %s180 = smul.u32 4, %s19
      %p181 = scmp.lt.s32.totalorder %s18, 1
      %s182 = scalar_select %p181, %s18, 1
      %p183 = scmp.lt.s32.totalorder %s180, 7
      %s184 = scalar_select %p183, %s180, 7
      %s185 = smul.addr %s182, 8
      %s186 = sadd.s32 %s184, %s185
      %s187 = smul.addr %s186, 8
      %s188 = scalar_lea.vmem %s3, %s187
      %p189 = scmp.lt.s32.totalorder %s18, 1
      %s190 = scalar_select %p189, %s18, 1
      %p191 = scmp.lt.s32.totalorder %s19, 1
      %s192 = scalar_select %p191, %s19, 1
      %s193 = smul.addr %s192, 6
      %s194 = smul.addr %s190, 12
      %s195 = sadd.s32 %s193, %s194
      %s196 = smul.addr %s195, 8
      %s197 = scalar_lea.vmem %s0, %s196
      %s198 = smul.u32 4, %s19
      %p199 = scmp.lt.s32.totalorder %s18, 1
      %s200 = scalar_select %p199, %s18, 1
      %p201 = scmp.lt.s32.totalorder %s198, 7
      %s202 = scalar_select %p201, %s198, 7
      %s203 = smul.addr %s200, 8
      %s204 = sadd.s32 %s202, %s203
      %s205 = smul.addr %s204, 8
      %s206 = scalar_lea.vmem %s3, %s205
      %s207 = smul.u32 4, %s19
      %208 = vst [vmem:[#allocation2 + $0x360] sm:$0xff] 0.0
      %209 = vst [vmem:[#allocation2 + $0x368] sm:$0xff] 0.0
      %210 = vst [vmem:[#allocation2 + $0x370] sm:$0xff] 0.0
      %211 = vst [vmem:[#allocation2 + $0x378] sm:$0xff] 0.0
      %212 = vst [vmem:[#allocation2 + $0x380] sm:$0xff] 0.0
      %213 = vst [vmem:[#allocation2 + $0x388] sm:$0xff] 0.0
      %214 = vst [vmem:[#allocation2 + $0x390] sm:$0xff] 0.0
      %215 = vst [vmem:[#allocation2 + $0x398] sm:$0xff] 0.0
      %216 = vst [vmem:[#allocation2 + $0x3a0] sm:$0xff] 0.0
      %217 = vst [vmem:[#allocation2 + $0x3a8] sm:$0xff] 0.0
      %218 = vst [vmem:[#allocation2 + $0x3b0] sm:$0xff] 0.0
      %219 = vst [vmem:[#allocation2 + $0x3b8] sm:$0xff] 0.0
      %220 = vst [vmem:[#allocation2 + $0x3c0] sm:$0xff] 0.0
      %221 = vst [vmem:[#allocation2 + $0x3c8] sm:$0xff] 0.0
      %222 = vst [vmem:[#allocation2 + $0x3d0] sm:$0xff] 0.0
      %223 = vst [vmem:[#allocation2 + $0x3d8] sm:$0xff] 0.0
      %224 = vst [vmem:[#allocation2 + $0x3e0] sm:$0xff] 0.0
      %225 = vst [vmem:[#allocation2 + $0x3e8] sm:$0xff] 0.0
      %226 = vst [vmem:[#allocation2 + $0x3f0] sm:$0xff] 0.0
      %227 = vst [vmem:[#allocation2 + $0x3f8] sm:$0xff] 0.0
      %v228 = vld [vmem:[%s197] sm:$0xff]
      %v229 = vld [vmem:[%s197 + $0x8] sm:$0xff]
      %v230 = vld [vmem:[%s197 + $0x10] sm:$0xff]
      %v231 = vld [vmem:[%s197 + $0x18] sm:$0xff]
      %232 = vst [vmem:[#allocation2] sm:$0xff] %v228
      %233 = vst [vmem:[#allocation2 + $0x8] sm:$0xff] %v229
      %234 = vst [vmem:[#allocation2 + $0x10] sm:$0xff] %v230
      %235 = vst [vmem:[#allocation2 + $0x18] sm:$0xff] %v231
      %v236 = vld [vmem:[%s197] sm:$0xff]
      %v237 = vld [vmem:[%s197 + $0x8] sm:$0xff]
      %v238 = vld [vmem:[%s197 + $0x10] sm:$0xff]
      %v239 = vld [vmem:[%s197 + $0x18] sm:$0xff]
      %v240 = vld [vmem:[%s197 + $0x20] sm:$0xff]
      %246 = vrot.lane.b32.xlu0 %v236, 127
      %v247 = vpop.permute.xlu0 %246
      %248 = vrot.lane.b32.xlu0 %v237, 127
      %v249 = vpop.permute.xlu0 %248
      %250 = vrot.lane.b32.xlu0 %v238, 127
      %v251 = vpop.permute.xlu0 %250
      %252 = vrot.lane.b32.xlu0 %v239, 127
      %v253 = vpop.permute.xlu0 %252
      %254 = vrot.lane.b32.xlu0 %v240, 127
      %v255 = vpop.permute.xlu0 %254
      %vm256 = vcmask 1039360
      %v257 = vsel %vm256, %v247, %v249
      %v258 = vsel %vm256, %v249, %v251
      %v259 = vsel %vm256, %v251, %v253
      %v260 = vsel %vm256, %v253, %v255
      %265 = vst [vmem:[#allocation2 + $0x20] sm:$0xff] %v257
      %266 = vst [vmem:[#allocation2 + $0x28] sm:$0xff] %v258
      %267 = vst [vmem:[#allocation2 + $0x30] sm:$0xff] %v259
      %268 = vst [vmem:[#allocation2 + $0x38] sm:$0xff] %v260
      %v269 = vld [vmem:[%s197] sm:$0xff]
      %v270 = vld [vmem:[%s197 + $0x8] sm:$0xff]
      %v271 = vld [vmem:[%s197 + $0x10] sm:$0xff]
      %v272 = vld [vmem:[%s197 + $0x18] sm:$0xff]
      %v273 = vld [vmem:[%s197 + $0x20] sm:$0xff]
      %279 = vrot.lane.b32.xlu0 %v269, 126
      %v280 = vpop.permute.xlu0 %279
      %281 = vrot.lane.b32.xlu0 %v270, 126
      %v282 = vpop.permute.xlu0 %281
      %283 = vrot.lane.b32.xlu0 %v271, 126
      %v284 = vpop.permute.xlu0 %283
      %285 = vrot.lane.b32.xlu0 %v272, 126
      %v286 = vpop.permute.xlu0 %285
      %287 = vrot.lane.b32.xlu0 %v273, 126
      %v288 = vpop.permute.xlu0 %287
      %vm289 = vcmask 1031168
      %v290 = vsel %vm289, %v280, %v282
      %v291 = vsel %vm289, %v282, %v284
      %v292 = vsel %vm289, %v284, %v286
      %v293 = vsel %vm289, %v286, %v288
      %298 = vst [vmem:[#allocation2 + $0x40] sm:$0xff] %v290
      %299 = vst [vmem:[#allocation2 + $0x48] sm:$0xff] %v291
      %300 = vst [vmem:[#allocation2 + $0x50] sm:$0xff] %v292
      %301 = vst [vmem:[#allocation2 + $0x58] sm:$0xff] %v293
      %v302 = vld [vmem:[%s197] sm:$0xff]
      %v303 = vld [vmem:[%s197 + $0x8] sm:$0xff]
      %v304 = vld [vmem:[%s197 + $0x10] sm:$0xff]
      %v305 = vld [vmem:[%s197 + $0x18] sm:$0xff]
      %v306 = vld [vmem:[%s197 + $0x20] sm:$0xff]
      %312 = vrot.lane.b32.xlu0 %v302, 118
      %v313 = vpop.permute.xlu0 %312
      %314 = vrot.lane.b32.xlu0 %v303, 118
      %v315 = vpop.permute.xlu0 %314
      %316 = vrot.lane.b32.xlu0 %v304, 118
      %v317 = vpop.permute.xlu0 %316
      %318 = vrot.lane.b32.xlu0 %v305, 118
      %v319 = vpop.permute.xlu0 %318
      %320 = vrot.lane.b32.xlu0 %v306, 118
      %v321 = vpop.permute.xlu0 %320
      %vm322 = vcmask 965632
      %v323 = vsel %vm322, %v313, %v315
      %v324 = vsel %vm322, %v315, %v317
      %v325 = vsel %vm322, %v317, %v319
      %v326 = vsel %vm322, %v319, %v321
      %331 = vst [vmem:[#allocation2 + $0x60] sm:$0xff] %v323
      %332 = vst [vmem:[#allocation2 + $0x68] sm:$0xff] %v324
      %333 = vst [vmem:[#allocation2 + $0x70] sm:$0xff] %v325
      %334 = vst [vmem:[#allocation2 + $0x78] sm:$0xff] %v326
      %v335 = vld [vmem:[%s197] sm:$0xff]
      %v336 = vld [vmem:[%s197 + $0x8] sm:$0xff]
      %v337 = vld [vmem:[%s197 + $0x10] sm:$0xff]
      %v338 = vld [vmem:[%s197 + $0x18] sm:$0xff]
      %v339 = vld [vmem:[%s197 + $0x20] sm:$0xff]
      %345 = vrot.lane.b32.xlu0 %v335, 117
      %v346 = vpop.permute.xlu0 %345
      %347 = vrot.lane.b32.xlu0 %v336, 117
      %v348 = vpop.permute.xlu0 %347
      %349 = vrot.lane.b32.xlu0 %v337, 117
      %v350 = vpop.permute.xlu0 %349
      %351 = vrot.lane.b32.xlu0 %v338, 117
      %v352 = vpop.permute.xlu0 %351
      %353 = vrot.lane.b32.xlu0 %v339, 117
      %v354 = vpop.permute.xlu0 %353
      %vm355 = vcmask 957440
      %v356 = vsel %vm355, %v346, %v348
      %v357 = vsel %vm355, %v348, %v350
      %v358 = vsel %vm355, %v350, %v352
      %v359 = vsel %vm355, %v352, %v354
      %364 = vst [vmem:[#allocation2 + $0x80] sm:$0xff] %v356
      %365 = vst [vmem:[#allocation2 + $0x88] sm:$0xff] %v357
      %366 = vst [vmem:[#allocation2 + $0x90] sm:$0xff] %v358
      %367 = vst [vmem:[#allocation2 + $0x98] sm:$0xff] %v359
      %v368 = vld [vmem:[%s197] sm:$0xff]
      %v369 = vld [vmem:[%s197 + $0x8] sm:$0xff]
      %v370 = vld [vmem:[%s197 + $0x10] sm:$0xff]
      %v371 = vld [vmem:[%s197 + $0x18] sm:$0xff]
      %v372 = vld [vmem:[%s197 + $0x20] sm:$0xff]
      %378 = vrot.lane.b32.xlu0 %v368, 116
      %v379 = vpop.permute.xlu0 %378
      %380 = vrot.lane.b32.xlu0 %v369, 116
      %v381 = vpop.permute.xlu0 %380
      %382 = vrot.lane.b32.xlu0 %v370, 116
      %v383 = vpop.permute.xlu0 %382
      %384 = vrot.lane.b32.xlu0 %v371, 116
      %v385 = vpop.permute.xlu0 %384
      %386 = vrot.lane.b32.xlu0 %v372, 116
      %v387 = vpop.permute.xlu0 %386
      %vm388 = vcmask 949248
      %v389 = vsel %vm388, %v379, %v381
      %v390 = vsel %vm388, %v381, %v383
      %v391 = vsel %vm388, %v383, %v385
      %v392 = vsel %vm388, %v385, %v387
      %397 = vst [vmem:[#allocation2 + $0xa0] sm:$0xff] %v389
      %398 = vst [vmem:[#allocation2 + $0xa8] sm:$0xff] %v390
      %399 = vst [vmem:[#allocation2 + $0xb0] sm:$0xff] %v391
      %400 = vst [vmem:[#allocation2 + $0xb8] sm:$0xff] %v392
      %v401 = vld [vmem:[%s197] sm:$0xff]
      %v402 = vld [vmem:[%s197 + $0x8] sm:$0xff]
      %v403 = vld [vmem:[%s197 + $0x10] sm:$0xff]
      %v404 = vld [vmem:[%s197 + $0x18] sm:$0xff]
      %v405 = vld [vmem:[%s197 + $0x20] sm:$0xff]
      %411 = vrot.lane.b32.xlu0 %v401, 108
      %v412 = vpop.permute.xlu0 %411
      %413 = vrot.lane.b32.xlu0 %v402, 108
      %v414 = vpop.permute.xlu0 %413
      %415 = vrot.lane.b32.xlu0 %v403, 108
      %v416 = vpop.permute.xlu0 %415
      %417 = vrot.lane.b32.xlu0 %v404, 108
      %v418 = vpop.permute.xlu0 %417
      %419 = vrot.lane.b32.xlu0 %v405, 108
      %v420 = vpop.permute.xlu0 %419
      %vm421 = vcmask 883712
      %v422 = vsel %vm421, %v412, %v414
      %v423 = vsel %vm421, %v414, %v416
      %v424 = vsel %vm421, %v416, %v418
      %v425 = vsel %vm421, %v418, %v420
      %430 = vst [vmem:[#allocation2 + $0xc0] sm:$0xff] %v422
      %431 = vst [vmem:[#allocation2 + $0xc8] sm:$0xff] %v423
      %432 = vst [vmem:[#allocation2 + $0xd0] sm:$0xff] %v424
      %433 = vst [vmem:[#allocation2 + $0xd8] sm:$0xff] %v425
      %v434 = vld [vmem:[%s197] sm:$0xff]
      %v435 = vld [vmem:[%s197 + $0x8] sm:$0xff]
      %v436 = vld [vmem:[%s197 + $0x10] sm:$0xff]
      %v437 = vld [vmem:[%s197 + $0x18] sm:$0xff]
      %v438 = vld [vmem:[%s197 + $0x20] sm:$0xff]
      %444 = vrot.lane.b32.xlu0 %v434, 107
      %v445 = vpop.permute.xlu0 %444
      %446 = vrot.lane.b32.xlu0 %v435, 107
      %v447 = vpop.permute.xlu0 %446
      %448 = vrot.lane.b32.xlu0 %v436, 107
      %v449 = vpop.permute.xlu0 %448
      %450 = vrot.lane.b32.xlu0 %v437, 107
      %v451 = vpop.permute.xlu0 %450
      %452 = vrot.lane.b32.xlu0 %v438, 107
      %v453 = vpop.permute.xlu0 %452
      %vm454 = vcmask 875520
      %v455 = vsel %vm454, %v445, %v447
      %v456 = vsel %vm454, %v447, %v449
      %v457 = vsel %vm454, %v449, %v451
      %v458 = vsel %vm454, %v451, %v453
      %463 = vst [vmem:[#allocation2 + $0xe0] sm:$0xff] %v455
      %464 = vst [vmem:[#allocation2 + $0xe8] sm:$0xff] %v456
      %465 = vst [vmem:[#allocation2 + $0xf0] sm:$0xff] %v457
      %466 = vst [vmem:[#allocation2 + $0xf8] sm:$0xff] %v458
      %v467 = vld [vmem:[%s197] sm:$0xff]
      %v468 = vld [vmem:[%s197 + $0x8] sm:$0xff]
      %v469 = vld [vmem:[%s197 + $0x10] sm:$0xff]
      %v470 = vld [vmem:[%s197 + $0x18] sm:$0xff]
      %v471 = vld [vmem:[%s197 + $0x20] sm:$0xff]
      %477 = vrot.lane.b32.xlu0 %v467, 106
      %v478 = vpop.permute.xlu0 %477
      %479 = vrot.lane.b32.xlu0 %v468, 106
      %v480 = vpop.permute.xlu0 %479
      %481 = vrot.lane.b32.xlu0 %v469, 106
      %v482 = vpop.permute.xlu0 %481
      %483 = vrot.lane.b32.xlu0 %v470, 106
      %v484 = vpop.permute.xlu0 %483
      %485 = vrot.lane.b32.xlu0 %v471, 106
      %v486 = vpop.permute.xlu0 %485
      %vm487 = vcmask 867328
      %v488 = vsel %vm487, %v478, %v480
      %v489 = vsel %vm487, %v480, %v482
      %v490 = vsel %vm487, %v482, %v484
      %v491 = vsel %vm487, %v484, %v486
      %496 = vst [vmem:[#allocation2 + $0x100] sm:$0xff] %v488
      %497 = vst [vmem:[#allocation2 + $0x108] sm:$0xff] %v489
      %498 = vst [vmem:[#allocation2 + $0x110] sm:$0xff] %v490
      %499 = vst [vmem:[#allocation2 + $0x118] sm:$0xff] %v491
      %v500 = vld [vmem:[%s197] sm:$0xff]
      %v501 = vld [vmem:[%s197 + $0x8] sm:$0xff]
      %v502 = vld [vmem:[%s197 + $0x10] sm:$0xff]
      %v503 = vld [vmem:[%s197 + $0x18] sm:$0xff]
      %v504 = vld [vmem:[%s197 + $0x20] sm:$0xff]
      %510 = vrot.lane.b32.xlu0 %v500, 28
      %v511 = vpop.permute.xlu0 %510
      %512 = vrot.lane.b32.xlu0 %v501, 28
      %v513 = vpop.permute.xlu0 %512
      %514 = vrot.lane.b32.xlu0 %v502, 28
      %v515 = vpop.permute.xlu0 %514
      %516 = vrot.lane.b32.xlu0 %v503, 28
      %v517 = vpop.permute.xlu0 %516
      %518 = vrot.lane.b32.xlu0 %v504, 28
      %v519 = vpop.permute.xlu0 %518
      %vm520 = vcmask 228352
      %v521 = vsel %vm520, %v511, %v513
      %v522 = vsel %vm520, %v513, %v515
      %v523 = vsel %vm520, %v515, %v517
      %v524 = vsel %vm520, %v517, %v519
      %529 = vst [vmem:[#allocation2 + $0x120] sm:$0xff] %v521
      %530 = vst [vmem:[#allocation2 + $0x128] sm:$0xff] %v522
      %531 = vst [vmem:[#allocation2 + $0x130] sm:$0xff] %v523
      %532 = vst [vmem:[#allocation2 + $0x138] sm:$0xff] %v524
      %v533 = vld [vmem:[%s197] sm:$0xff]
      %v534 = vld [vmem:[%s197 + $0x8] sm:$0xff]
      %v535 = vld [vmem:[%s197 + $0x10] sm:$0xff]
      %v536 = vld [vmem:[%s197 + $0x18] sm:$0xff]
      %v537 = vld [vmem:[%s197 + $0x20] sm:$0xff]
      %543 = vrot.lane.b32.xlu0 %v533, 27
      %v544 = vpop.permute.xlu0 %543
      %545 = vrot.lane.b32.xlu0 %v534, 27
      %v546 = vpop.permute.xlu0 %545
      %547 = vrot.lane.b32.xlu0 %v535, 27
      %v548 = vpop.permute.xlu0 %547
      %549 = vrot.lane.b32.xlu0 %v536, 27
      %v550 = vpop.permute.xlu0 %549
      %551 = vrot.lane.b32.xlu0 %v537, 27
      %v552 = vpop.permute.xlu0 %551
      %vm553 = vcmask 220160
      %v554 = vsel %vm553, %v544, %v546
      %v555 = vsel %vm553, %v546, %v548
      %v556 = vsel %vm553, %v548, %v550
      %v557 = vsel %vm553, %v550, %v552
      %562 = vst [vmem:[#allocation2 + $0x140] sm:$0xff] %v554
      %563 = vst [vmem:[#allocation2 + $0x148] sm:$0xff] %v555
      %564 = vst [vmem:[#allocation2 + $0x150] sm:$0xff] %v556
      %565 = vst [vmem:[#allocation2 + $0x158] sm:$0xff] %v557
      %v566 = vld [vmem:[%s197] sm:$0xff]
      %v567 = vld [vmem:[%s197 + $0x8] sm:$0xff]
      %v568 = vld [vmem:[%s197 + $0x10] sm:$0xff]
      %v569 = vld [vmem:[%s197 + $0x18] sm:$0xff]
      %v570 = vld [vmem:[%s197 + $0x20] sm:$0xff]
      %576 = vrot.lane.b32.xlu0 %v566, 26
      %v577 = vpop.permute.xlu0 %576
      %578 = vrot.lane.b32.xlu0 %v567, 26
      %v579 = vpop.permute.xlu0 %578
      %580 = vrot.lane.b32.xlu0 %v568, 26
      %v581 = vpop.permute.xlu0 %580
      %582 = vrot.lane.b32.xlu0 %v569, 26
      %v583 = vpop.permute.xlu0 %582
      %584 = vrot.lane.b32.xlu0 %v570, 26
      %v585 = vpop.permute.xlu0 %584
      %vm586 = vcmask 211968
      %v587 = vsel %vm586, %v577, %v579
      %v588 = vsel %vm586, %v579, %v581
      %v589 = vsel %vm586, %v581, %v583
      %v590 = vsel %vm586, %v583, %v585
      %595 = vst [vmem:[#allocation2 + $0x160] sm:$0xff] %v587
      %596 = vst [vmem:[#allocation2 + $0x168] sm:$0xff] %v588
      %597 = vst [vmem:[#allocation2 + $0x170] sm:$0xff] %v589
      %598 = vst [vmem:[#allocation2 + $0x178] sm:$0xff] %v590
      %v599 = vld [vmem:[%s197] sm:$0xff]
      %v600 = vld [vmem:[%s197 + $0x8] sm:$0xff]
      %v601 = vld [vmem:[%s197 + $0x10] sm:$0xff]
      %v602 = vld [vmem:[%s197 + $0x18] sm:$0xff]
      %v603 = vld [vmem:[%s197 + $0x20] sm:$0xff]
      %609 = vrot.lane.b32.xlu0 %v599, 18
      %v610 = vpop.permute.xlu0 %609
      %611 = vrot.lane.b32.xlu0 %v600, 18
      %v612 = vpop.permute.xlu0 %611
      %613 = vrot.lane.b32.xlu0 %v601, 18
      %v614 = vpop.permute.xlu0 %613
      %615 = vrot.lane.b32.xlu0 %v602, 18
      %v616 = vpop.permute.xlu0 %615
      %617 = vrot.lane.b32.xlu0 %v603, 18
      %v618 = vpop.permute.xlu0 %617
      %vm619 = vcmask 146432
      %v620 = vsel %vm619, %v610, %v612
      %v621 = vsel %vm619, %v612, %v614
      %v622 = vsel %vm619, %v614, %v616
      %v623 = vsel %vm619, %v616, %v618
      %628 = vst [vmem:[#allocation2 + $0x180] sm:$0xff] %v620
      %629 = vst [vmem:[#allocation2 + $0x188] sm:$0xff] %v621
      %630 = vst [vmem:[#allocation2 + $0x190] sm:$0xff] %v622
      %631 = vst [vmem:[#allocation2 + $0x198] sm:$0xff] %v623
      %v632 = vld [vmem:[%s197] sm:$0xff]
      %v633 = vld [vmem:[%s197 + $0x8] sm:$0xff]
      %v634 = vld [vmem:[%s197 + $0x10] sm:$0xff]
      %v635 = vld [vmem:[%s197 + $0x18] sm:$0xff]
      %v636 = vld [vmem:[%s197 + $0x20] sm:$0xff]
      %642 = vrot.lane.b32.xlu0 %v632, 17
      %v643 = vpop.permute.xlu0 %642
      %644 = vrot.lane.b32.xlu0 %v633, 17
      %v645 = vpop.permute.xlu0 %644
      %646 = vrot.lane.b32.xlu0 %v634, 17
      %v647 = vpop.permute.xlu0 %646
      %648 = vrot.lane.b32.xlu0 %v635, 17
      %v649 = vpop.permute.xlu0 %648
      %650 = vrot.lane.b32.xlu0 %v636, 17
      %v651 = vpop.permute.xlu0 %650
      %vm652 = vcmask 138240
      %v653 = vsel %vm652, %v643, %v645
      %v654 = vsel %vm652, %v645, %v647
      %v655 = vsel %vm652, %v647, %v649
      %v656 = vsel %vm652, %v649, %v651
      %661 = vst [vmem:[#allocation2 + $0x1a0] sm:$0xff] %v653
      %662 = vst [vmem:[#allocation2 + $0x1a8] sm:$0xff] %v654
      %663 = vst [vmem:[#allocation2 + $0x1b0] sm:$0xff] %v655
      %664 = vst [vmem:[#allocation2 + $0x1b8] sm:$0xff] %v656
      %v665 = vld [vmem:[%s197] sm:$0xff]
      %v666 = vld [vmem:[%s197 + $0x8] sm:$0xff]
      %v667 = vld [vmem:[%s197 + $0x10] sm:$0xff]
      %v668 = vld [vmem:[%s197 + $0x18] sm:$0xff]
      %v669 = vld [vmem:[%s197 + $0x20] sm:$0xff]
      %675 = vrot.lane.b32.xlu0 %v665, 16
      %v676 = vpop.permute.xlu0 %675
      %677 = vrot.lane.b32.xlu0 %v666, 16
      %v678 = vpop.permute.xlu0 %677
      %679 = vrot.lane.b32.xlu0 %v667, 16
      %v680 = vpop.permute.xlu0 %679
      %681 = vrot.lane.b32.xlu0 %v668, 16
      %v682 = vpop.permute.xlu0 %681
      %683 = vrot.lane.b32.xlu0 %v669, 16
      %v684 = vpop.permute.xlu0 %683
      %vm685 = vcmask 130048
      %v686 = vsel %vm685, %v676, %v678
      %v687 = vsel %vm685, %v678, %v680
      %v688 = vsel %vm685, %v680, %v682
      %v689 = vsel %vm685, %v682, %v684
      %694 = vst [vmem:[#allocation2 + $0x1c0] sm:$0xff] %v686
      %695 = vst [vmem:[#allocation2 + $0x1c8] sm:$0xff] %v687
      %696 = vst [vmem:[#allocation2 + $0x1d0] sm:$0xff] %v688
      %697 = vst [vmem:[#allocation2 + $0x1d8] sm:$0xff] %v689
      %v698 = vld [vmem:[%s197] sm:$0xff]
      %v699 = vld [vmem:[%s197 + $0x8] sm:$0xff]
      %v700 = vld [vmem:[%s197 + $0x10] sm:$0xff]
      %v701 = vld [vmem:[%s197 + $0x18] sm:$0xff]
      %v702 = vld [vmem:[%s197 + $0x20] sm:$0xff]
      %708 = vrot.lane.b32.xlu0 %v698, 8
      %v709 = vpop.permute.xlu0 %708
      %710 = vrot.lane.b32.xlu0 %v699, 8
      %v711 = vpop.permute.xlu0 %710
      %712 = vrot.lane.b32.xlu0 %v700, 8
      %v713 = vpop.permute.xlu0 %712
      %714 = vrot.lane.b32.xlu0 %v701, 8
      %v715 = vpop.permute.xlu0 %714
      %716 = vrot.lane.b32.xlu0 %v702, 8
      %v717 = vpop.permute.xlu0 %716
      %vm718 = vcmask 64512
      %v719 = vsel %vm718, %v709, %v711
      %v720 = vsel %vm718, %v711, %v713
      %v721 = vsel %vm718, %v713, %v715
      %v722 = vsel %vm718, %v715, %v717
      %727 = vst [vmem:[#allocation2 + $0x1e0] sm:$0xff] %v719
      %728 = vst [vmem:[#allocation2 + $0x1e8] sm:$0xff] %v720
      %729 = vst [vmem:[#allocation2 + $0x1f0] sm:$0xff] %v721
      %730 = vst [vmem:[#allocation2 + $0x1f8] sm:$0xff] %v722
      %v731 = vld [vmem:[%s197] sm:$0xff]
      %v732 = vld [vmem:[%s197 + $0x8] sm:$0xff]
      %v733 = vld [vmem:[%s197 + $0x10] sm:$0xff]
      %v734 = vld [vmem:[%s197 + $0x18] sm:$0xff]
      %v735 = vld [vmem:[%s197 + $0x20] sm:$0xff]
      %741 = vrot.lane.b32.xlu0 %v731, 7
      %v742 = vpop.permute.xlu0 %741
      %743 = vrot.lane.b32.xlu0 %v732, 7
      %v744 = vpop.permute.xlu0 %743
      %745 = vrot.lane.b32.xlu0 %v733, 7
      %v746 = vpop.permute.xlu0 %745
      %747 = vrot.lane.b32.xlu0 %v734, 7
      %v748 = vpop.permute.xlu0 %747
      %749 = vrot.lane.b32.xlu0 %v735, 7
      %v750 = vpop.permute.xlu0 %749
      %vm751 = vcmask 56320
      %v752 = vsel %vm751, %v742, %v744
      %v753 = vsel %vm751, %v744, %v746
      %v754 = vsel %vm751, %v746, %v748
      %v755 = vsel %vm751, %v748, %v750
      %760 = vst [vmem:[#allocation2 + $0x200] sm:$0xff] %v752
      %761 = vst [vmem:[#allocation2 + $0x208] sm:$0xff] %v753
      %762 = vst [vmem:[#allocation2 + $0x210] sm:$0xff] %v754
      %763 = vst [vmem:[#allocation2 + $0x218] sm:$0xff] %v755
      %v764 = vld [vmem:[%s197] sm:$0xff]
      %v765 = vld [vmem:[%s197 + $0x8] sm:$0xff]
      %v766 = vld [vmem:[%s197 + $0x10] sm:$0xff]
      %v767 = vld [vmem:[%s197 + $0x18] sm:$0xff]
      %v768 = vld [vmem:[%s197 + $0x20] sm:$0xff]
      %774 = vrot.lane.b32.xlu0 %v764, 6
      %v775 = vpop.permute.xlu0 %774
      %776 = vrot.lane.b32.xlu0 %v765, 6
      %v777 = vpop.permute.xlu0 %776
      %778 = vrot.lane.b32.xlu0 %v766, 6
      %v779 = vpop.permute.xlu0 %778
      %780 = vrot.lane.b32.xlu0 %v767, 6
      %v781 = vpop.permute.xlu0 %780
      %782 = vrot.lane.b32.xlu0 %v768, 6
      %v783 = vpop.permute.xlu0 %782
      %vm784 = vcmask 48128
      %v785 = vsel %vm784, %v775, %v777
      %v786 = vsel %vm784, %v777, %v779
      %v787 = vsel %vm784, %v779, %v781
      %v788 = vsel %vm784, %v781, %v783
      %793 = vst [vmem:[#allocation2 + $0x220] sm:$0xff] %v785
      %794 = vst [vmem:[#allocation2 + $0x228] sm:$0xff] %v786
      %795 = vst [vmem:[#allocation2 + $0x230] sm:$0xff] %v787
      %796 = vst [vmem:[#allocation2 + $0x238] sm:$0xff] %v788
      %v797 = vld [vmem:[%s197 + $0x8] sm:$0xff]
      %v798 = vld [vmem:[%s197 + $0x10] sm:$0xff]
      %v799 = vld [vmem:[%s197 + $0x18] sm:$0xff]
      %v800 = vld [vmem:[%s197 + $0x20] sm:$0xff]
      %v801 = vld [vmem:[%s197 + $0x28] sm:$0xff]
      %807 = vrot.lane.b32.xlu0 %v797, 56
      %v808 = vpop.permute.xlu0 %807
      %809 = vrot.lane.b32.xlu0 %v798, 56
      %v810 = vpop.permute.xlu0 %809
      %811 = vrot.lane.b32.xlu0 %v799, 56
      %v812 = vpop.permute.xlu0 %811
      %813 = vrot.lane.b32.xlu0 %v800, 56
      %v814 = vpop.permute.xlu0 %813
      %815 = vrot.lane.b32.xlu0 %v801, 56
      %v816 = vpop.permute.xlu0 %815
      %vm817 = vcmask 457728
      %v818 = vsel %vm817, %v808, %v810
      %v819 = vsel %vm817, %v810, %v812
      %v820 = vsel %vm817, %v812, %v814
      %v821 = vsel %vm817, %v814, %v816
      %826 = vst [vmem:[#allocation2 + $0x240] sm:$0xff] %v818
      %827 = vst [vmem:[#allocation2 + $0x248] sm:$0xff] %v819
      %828 = vst [vmem:[#allocation2 + $0x250] sm:$0xff] %v820
      %829 = vst [vmem:[#allocation2 + $0x258] sm:$0xff] %v821
      %v830 = vld [vmem:[%s197 + $0x8] sm:$0xff]
      %v831 = vld [vmem:[%s197 + $0x10] sm:$0xff]
      %v832 = vld [vmem:[%s197 + $0x18] sm:$0xff]
      %v833 = vld [vmem:[%s197 + $0x20] sm:$0xff]
      %v834 = vld [vmem:[%s197 + $0x28] sm:$0xff]
      %840 = vrot.lane.b32.xlu0 %v830, 55
      %v841 = vpop.permute.xlu0 %840
      %842 = vrot.lane.b32.xlu0 %v831, 55
      %v843 = vpop.permute.xlu0 %842
      %844 = vrot.lane.b32.xlu0 %v832, 55
      %v845 = vpop.permute.xlu0 %844
      %846 = vrot.lane.b32.xlu0 %v833, 55
      %v847 = vpop.permute.xlu0 %846
      %848 = vrot.lane.b32.xlu0 %v834, 55
      %v849 = vpop.permute.xlu0 %848
      %vm850 = vcmask 449536
      %v851 = vsel %vm850, %v841, %v843
      %v852 = vsel %vm850, %v843, %v845
      %v853 = vsel %vm850, %v845, %v847
      %v854 = vsel %vm850, %v847, %v849
      %859 = vst [vmem:[#allocation2 + $0x260] sm:$0xff] %v851
      %860 = vst [vmem:[#allocation2 + $0x268] sm:$0xff] %v852
      %861 = vst [vmem:[#allocation2 + $0x270] sm:$0xff] %v853
      %862 = vst [vmem:[#allocation2 + $0x278] sm:$0xff] %v854
      %v863 = vld [vmem:[%s197 + $0x8] sm:$0xff]
      %v864 = vld [vmem:[%s197 + $0x10] sm:$0xff]
      %v865 = vld [vmem:[%s197 + $0x18] sm:$0xff]
      %v866 = vld [vmem:[%s197 + $0x20] sm:$0xff]
      %v867 = vld [vmem:[%s197 + $0x28] sm:$0xff]
      %873 = vrot.lane.b32.xlu0 %v863, 54
      %v874 = vpop.permute.xlu0 %873
      %875 = vrot.lane.b32.xlu0 %v864, 54
      %v876 = vpop.permute.xlu0 %875
      %877 = vrot.lane.b32.xlu0 %v865, 54
      %v878 = vpop.permute.xlu0 %877
      %879 = vrot.lane.b32.xlu0 %v866, 54
      %v880 = vpop.permute.xlu0 %879
      %881 = vrot.lane.b32.xlu0 %v867, 54
      %v882 = vpop.permute.xlu0 %881
      %vm883 = vcmask 441344
      %v884 = vsel %vm883, %v874, %v876
      %v885 = vsel %vm883, %v876, %v878
      %v886 = vsel %vm883, %v878, %v880
      %v887 = vsel %vm883, %v880, %v882
      %892 = vst [vmem:[#allocation2 + $0x280] sm:$0xff] %v884
      %893 = vst [vmem:[#allocation2 + $0x288] sm:$0xff] %v885
      %894 = vst [vmem:[#allocation2 + $0x290] sm:$0xff] %v886
      %895 = vst [vmem:[#allocation2 + $0x298] sm:$0xff] %v887
      %v896 = vld [vmem:[%s197 + $0x8] sm:$0xff]
      %v897 = vld [vmem:[%s197 + $0x10] sm:$0xff]
      %v898 = vld [vmem:[%s197 + $0x18] sm:$0xff]
      %v899 = vld [vmem:[%s197 + $0x20] sm:$0xff]
      %v900 = vld [vmem:[%s197 + $0x28] sm:$0xff]
      %906 = vrot.lane.b32.xlu0 %v896, 46
      %v907 = vpop.permute.xlu0 %906
      %908 = vrot.lane.b32.xlu0 %v897, 46
      %v909 = vpop.permute.xlu0 %908
      %910 = vrot.lane.b32.xlu0 %v898, 46
      %v911 = vpop.permute.xlu0 %910
      %912 = vrot.lane.b32.xlu0 %v899, 46
      %v913 = vpop.permute.xlu0 %912
      %914 = vrot.lane.b32.xlu0 %v900, 46
      %v915 = vpop.permute.xlu0 %914
      %vm916 = vcmask 375808
      %v917 = vsel %vm916, %v907, %v909
      %v918 = vsel %vm916, %v909, %v911
      %v919 = vsel %vm916, %v911, %v913
      %v920 = vsel %vm916, %v913, %v915
      %925 = vst [vmem:[#allocation2 + $0x2a0] sm:$0xff] %v917
      %926 = vst [vmem:[#allocation2 + $0x2a8] sm:$0xff] %v918
      %927 = vst [vmem:[#allocation2 + $0x2b0] sm:$0xff] %v919
      %928 = vst [vmem:[#allocation2 + $0x2b8] sm:$0xff] %v920
      %v929 = vld [vmem:[%s197 + $0x8] sm:$0xff]
      %v930 = vld [vmem:[%s197 + $0x10] sm:$0xff]
      %v931 = vld [vmem:[%s197 + $0x18] sm:$0xff]
      %v932 = vld [vmem:[%s197 + $0x20] sm:$0xff]
      %v933 = vld [vmem:[%s197 + $0x28] sm:$0xff]
      %939 = vrot.lane.b32.xlu0 %v929, 45
      %v940 = vpop.permute.xlu0 %939
      %941 = vrot.lane.b32.xlu0 %v930, 45
      %v942 = vpop.permute.xlu0 %941
      %943 = vrot.lane.b32.xlu0 %v931, 45
      %v944 = vpop.permute.xlu0 %943
      %945 = vrot.lane.b32.xlu0 %v932, 45
      %v946 = vpop.permute.xlu0 %945
      %947 = vrot.lane.b32.xlu0 %v933, 45
      %v948 = vpop.permute.xlu0 %947
      %vm949 = vcmask 367616
      %v950 = vsel %vm949, %v940, %v942
      %v951 = vsel %vm949, %v942, %v944
      %v952 = vsel %vm949, %v944, %v946
      %v953 = vsel %vm949, %v946, %v948
      %958 = vst [vmem:[#allocation2 + $0x2c0] sm:$0xff] %v950
      %959 = vst [vmem:[#allocation2 + $0x2c8] sm:$0xff] %v951
      %960 = vst [vmem:[#allocation2 + $0x2d0] sm:$0xff] %v952
      %961 = vst [vmem:[#allocation2 + $0x2d8] sm:$0xff] %v953
      %v962 = vld [vmem:[%s197 + $0x8] sm:$0xff]
      %v963 = vld [vmem:[%s197 + $0x10] sm:$0xff]
      %v964 = vld [vmem:[%s197 + $0x18] sm:$0xff]
      %v965 = vld [vmem:[%s197 + $0x20] sm:$0xff]
      %v966 = vld [vmem:[%s197 + $0x28] sm:$0xff]
      %972 = vrot.lane.b32.xlu0 %v962, 44
      %v973 = vpop.permute.xlu0 %972
      %974 = vrot.lane.b32.xlu0 %v963, 44
      %v975 = vpop.permute.xlu0 %974
      %976 = vrot.lane.b32.xlu0 %v964, 44
      %v977 = vpop.permute.xlu0 %976
      %978 = vrot.lane.b32.xlu0 %v965, 44
      %v979 = vpop.permute.xlu0 %978
      %980 = vrot.lane.b32.xlu0 %v966, 44
      %v981 = vpop.permute.xlu0 %980
      %vm982 = vcmask 359424
      %v983 = vsel %vm982, %v973, %v975
      %v984 = vsel %vm982, %v975, %v977
      %v985 = vsel %vm982, %v977, %v979
      %v986 = vsel %vm982, %v979, %v981
      %991 = vst [vmem:[#allocation2 + $0x2e0] sm:$0xff] %v983
      %992 = vst [vmem:[#allocation2 + $0x2e8] sm:$0xff] %v984
      %993 = vst [vmem:[#allocation2 + $0x2f0] sm:$0xff] %v985
      %994 = vst [vmem:[#allocation2 + $0x2f8] sm:$0xff] %v986
      %v995 = vld [vmem:[%s197 + $0x8] sm:$0xff]
      %v996 = vld [vmem:[%s197 + $0x10] sm:$0xff]
      %v997 = vld [vmem:[%s197 + $0x18] sm:$0xff]
      %v998 = vld [vmem:[%s197 + $0x20] sm:$0xff]
      %v999 = vld [vmem:[%s197 + $0x28] sm:$0xff]
      %1005 = vrot.lane.b32.xlu0 %v995, 36
      %v1006 = vpop.permute.xlu0 %1005
      %1007 = vrot.lane.b32.xlu0 %v996, 36
      %v1008 = vpop.permute.xlu0 %1007
      %1009 = vrot.lane.b32.xlu0 %v997, 36
      %v1010 = vpop.permute.xlu0 %1009
      %1011 = vrot.lane.b32.xlu0 %v998, 36
      %v1012 = vpop.permute.xlu0 %1011
      %1013 = vrot.lane.b32.xlu0 %v999, 36
      %v1014 = vpop.permute.xlu0 %1013
      %vm1015 = vcmask 293888
      %v1016 = vsel %vm1015, %v1006, %v1008
      %v1017 = vsel %vm1015, %v1008, %v1010
      %v1018 = vsel %vm1015, %v1010, %v1012
      %v1019 = vsel %vm1015, %v1012, %v1014
      %1024 = vst [vmem:[#allocation2 + $0x300] sm:$0xff] %v1016
      %1025 = vst [vmem:[#allocation2 + $0x308] sm:$0xff] %v1017
      %1026 = vst [vmem:[#allocation2 + $0x310] sm:$0xff] %v1018
      %1027 = vst [vmem:[#allocation2 + $0x318] sm:$0xff] %v1019
      %v1028 = vld [vmem:[%s197 + $0x8] sm:$0xff]
      %v1029 = vld [vmem:[%s197 + $0x10] sm:$0xff]
      %v1030 = vld [vmem:[%s197 + $0x18] sm:$0xff]
      %v1031 = vld [vmem:[%s197 + $0x20] sm:$0xff]
      %v1032 = vld [vmem:[%s197 + $0x28] sm:$0xff]
      %1038 = vrot.lane.b32.xlu0 %v1028, 35
      %v1039 = vpop.permute.xlu0 %1038
      %1040 = vrot.lane.b32.xlu0 %v1029, 35
      %v1041 = vpop.permute.xlu0 %1040
      %1042 = vrot.lane.b32.xlu0 %v1030, 35
      %v1043 = vpop.permute.xlu0 %1042
      %1044 = vrot.lane.b32.xlu0 %v1031, 35
      %v1045 = vpop.permute.xlu0 %1044
      %1046 = vrot.lane.b32.xlu0 %v1032, 35
      %v1047 = vpop.permute.xlu0 %1046
      %vm1048 = vcmask 285696
      %v1049 = vsel %vm1048, %v1039, %v1041
      %v1050 = vsel %vm1048, %v1041, %v1043
      %v1051 = vsel %vm1048, %v1043, %v1045
      %v1052 = vsel %vm1048, %v1045, %v1047
      %1057 = vst [vmem:[#allocation2 + $0x320] sm:$0xff] %v1049
      %1058 = vst [vmem:[#allocation2 + $0x328] sm:$0xff] %v1050
      %1059 = vst [vmem:[#allocation2 + $0x330] sm:$0xff] %v1051
      %1060 = vst [vmem:[#allocation2 + $0x338] sm:$0xff] %v1052
      %v1061 = vld [vmem:[%s197 + $0x8] sm:$0xff]
      %v1062 = vld [vmem:[%s197 + $0x10] sm:$0xff]
      %v1063 = vld [vmem:[%s197 + $0x18] sm:$0xff]
      %v1064 = vld [vmem:[%s197 + $0x20] sm:$0xff]
      %v1065 = vld [vmem:[%s197 + $0x28] sm:$0xff]
      %1071 = vrot.lane.b32.xlu0 %v1061, 34
      %v1072 = vpop.permute.xlu0 %1071
      %1073 = vrot.lane.b32.xlu0 %v1062, 34
      %v1074 = vpop.permute.xlu0 %1073
      %1075 = vrot.lane.b32.xlu0 %v1063, 34
      %v1076 = vpop.permute.xlu0 %1075
      %1077 = vrot.lane.b32.xlu0 %v1064, 34
      %v1078 = vpop.permute.xlu0 %1077
      %1079 = vrot.lane.b32.xlu0 %v1065, 34
      %v1080 = vpop.permute.xlu0 %1079
      %vm1081 = vcmask 277504
      %v1082 = vsel %vm1081, %v1072, %v1074
      %v1083 = vsel %vm1081, %v1074, %v1076
      %v1084 = vsel %vm1081, %v1076, %v1078
      %v1085 = vsel %vm1081, %v1078, %v1080
      %1090 = vst [vmem:[#allocation2 + $0x340] sm:$0xff] %v1082
      %1091 = vst [vmem:[#allocation2 + $0x348] sm:$0xff] %v1083
      %1092 = vst [vmem:[#allocation2 + $0x350] sm:$0xff] %v1084
      %1093 = vst [vmem:[#allocation2 + $0x358] sm:$0xff] %v1085
      %v1094 = vld [vmem:[%s1] sm:$0xff]
      %v1095 = vld [vmem:[%s1 + $0x8] sm:$0xff]
      %v1096 = vld [vmem:[#allocation2] sm:$0xff]
      %v1097 = vld [vmem:[#allocation2 + $0x8] sm:$0xff]
      %v1098 = vld [vmem:[#allocation2 + $0x10] sm:$0xff]
      %v1099 = vld [vmem:[#allocation2 + $0x18] sm:$0xff]
      %v1100 = vld [vmem:[#allocation2 + $0x20] sm:$0xff]
      %v1101 = vld [vmem:[#allocation2 + $0x28] sm:$0xff]
      %v1102 = vld [vmem:[#allocation2 + $0x30] sm:$0xff]
      %v1103 = vld [vmem:[#allocation2 + $0x38] sm:$0xff]
      %v1104 = vld [vmem:[#allocation2 + $0x40] sm:$0xff]
      %v1105 = vld [vmem:[#allocation2 + $0x48] sm:$0xff]
      %v1106 = vld [vmem:[#allocation2 + $0x50] sm:$0xff]
      %v1107 = vld [vmem:[#allocation2 + $0x58] sm:$0xff]
      %v1108 = vld [vmem:[#allocation2 + $0x60] sm:$0xff]
      %v1109 = vld [vmem:[#allocation2 + $0x68] sm:$0xff]
      %v1110 = vld [vmem:[#allocation2 + $0x70] sm:$0xff]
      %v1111 = vld [vmem:[#allocation2 + $0x78] sm:$0xff]
      %v1112 = vld [vmem:[#allocation2 + $0x80] sm:$0xff]
      %v1113 = vld [vmem:[#allocation2 + $0x88] sm:$0xff]
      %v1114 = vld [vmem:[#allocation2 + $0x90] sm:$0xff]
      %v1115 = vld [vmem:[#allocation2 + $0x98] sm:$0xff]
      %v1116 = vld [vmem:[#allocation2 + $0xa0] sm:$0xff]
      %v1117 = vld [vmem:[#allocation2 + $0xa8] sm:$0xff]
      %v1118 = vld [vmem:[#allocation2 + $0xb0] sm:$0xff]
      %v1119 = vld [vmem:[#allocation2 + $0xb8] sm:$0xff]
      %v1120 = vld [vmem:[#allocation2 + $0xc0] sm:$0xff]
      %v1121 = vld [vmem:[#allocation2 + $0xc8] sm:$0xff]
      %v1122 = vld [vmem:[#allocation2 + $0xd0] sm:$0xff]
      %v1123 = vld [vmem:[#allocation2 + $0xd8] sm:$0xff]
      %v1124 = vld [vmem:[#allocation2 + $0xe0] sm:$0xff]
      %v1125 = vld [vmem:[#allocation2 + $0xe8] sm:$0xff]
      %v1126 = vld [vmem:[#allocation2 + $0xf0] sm:$0xff]
      %v1127 = vld [vmem:[#allocation2 + $0xf8] sm:$0xff]
      %v1128 = vld [vmem:[#allocation2 + $0x100] sm:$0xff]
      %v1129 = vld [vmem:[#allocation2 + $0x108] sm:$0xff]
      %v1130 = vld [vmem:[#allocation2 + $0x110] sm:$0xff]
      %v1131 = vld [vmem:[#allocation2 + $0x118] sm:$0xff]
      %v1132 = vld [vmem:[#allocation2 + $0x120] sm:$0xff]
      %v1133 = vld [vmem:[#allocation2 + $0x128] sm:$0xff]
      %v1134 = vld [vmem:[#allocation2 + $0x130] sm:$0xff]
      %v1135 = vld [vmem:[#allocation2 + $0x138] sm:$0xff]
      %v1136 = vld [vmem:[#allocation2 + $0x140] sm:$0xff]
      %v1137 = vld [vmem:[#allocation2 + $0x148] sm:$0xff]
      %v1138 = vld [vmem:[#allocation2 + $0x150] sm:$0xff]
      %v1139 = vld [vmem:[#allocation2 + $0x158] sm:$0xff]
      %v1140 = vld [vmem:[#allocation2 + $0x160] sm:$0xff]
      %v1141 = vld [vmem:[#allocation2 + $0x168] sm:$0xff]
      %v1142 = vld [vmem:[#allocation2 + $0x170] sm:$0xff]
      %v1143 = vld [vmem:[#allocation2 + $0x178] sm:$0xff]
      %v1144 = vld [vmem:[#allocation2 + $0x180] sm:$0xff]
      %v1145 = vld [vmem:[#allocation2 + $0x188] sm:$0xff]
      %v1146 = vld [vmem:[#allocation2 + $0x190] sm:$0xff]
      %v1147 = vld [vmem:[#allocation2 + $0x198] sm:$0xff]
      %v1148 = vld [vmem:[#allocation2 + $0x1a0] sm:$0xff]
      %v1149 = vld [vmem:[#allocation2 + $0x1a8] sm:$0xff]
      %v1150 = vld [vmem:[#allocation2 + $0x1b0] sm:$0xff]
      %v1151 = vld [vmem:[#allocation2 + $0x1b8] sm:$0xff]
      %v1152 = vld [vmem:[#allocation2 + $0x1c0] sm:$0xff]
      %v1153 = vld [vmem:[#allocation2 + $0x1c8] sm:$0xff]
      %v1154 = vld [vmem:[#allocation2 + $0x1d0] sm:$0xff]
      %v1155 = vld [vmem:[#allocation2 + $0x1d8] sm:$0xff]
      %v1156 = vld [vmem:[#allocation2 + $0x1e0] sm:$0xff]
      %v1157 = vld [vmem:[#allocation2 + $0x1e8] sm:$0xff]
      %v1158 = vld [vmem:[#allocation2 + $0x1f0] sm:$0xff]
      %v1159 = vld [vmem:[#allocation2 + $0x1f8] sm:$0xff]
      %v1160 = vld [vmem:[#allocation2 + $0x200] sm:$0xff]
      %v1161 = vld [vmem:[#allocation2 + $0x208] sm:$0xff]
      %v1162 = vld [vmem:[#allocation2 + $0x210] sm:$0xff]
      %v1163 = vld [vmem:[#allocation2 + $0x218] sm:$0xff]
      %v1164 = vld [vmem:[#allocation2 + $0x220] sm:$0xff]
      %v1165 = vld [vmem:[#allocation2 + $0x228] sm:$0xff]
      %v1166 = vld [vmem:[#allocation2 + $0x230] sm:$0xff]
      %v1167 = vld [vmem:[#allocation2 + $0x238] sm:$0xff]
      %v1168 = vld [vmem:[#allocation2 + $0x240] sm:$0xff]
      %v1169 = vld [vmem:[#allocation2 + $0x248] sm:$0xff]
      %v1170 = vld [vmem:[#allocation2 + $0x250] sm:$0xff]
      %v1171 = vld [vmem:[#allocation2 + $0x258] sm:$0xff]
      %v1172 = vld [vmem:[#allocation2 + $0x260] sm:$0xff]
      %v1173 = vld [vmem:[#allocation2 + $0x268] sm:$0xff]
      %v1174 = vld [vmem:[#allocation2 + $0x270] sm:$0xff]
      %v1175 = vld [vmem:[#allocation2 + $0x278] sm:$0xff]
      %v1176 = vld [vmem:[#allocation2 + $0x280] sm:$0xff]
      %v1177 = vld [vmem:[#allocation2 + $0x288] sm:$0xff]
      %v1178 = vld [vmem:[#allocation2 + $0x290] sm:$0xff]
      %v1179 = vld [vmem:[#allocation2 + $0x298] sm:$0xff]
      %v1180 = vld [vmem:[#allocation2 + $0x2a0] sm:$0xff]
      %v1181 = vld [vmem:[#allocation2 + $0x2a8] sm:$0xff]
      %v1182 = vld [vmem:[#allocation2 + $0x2b0] sm:$0xff]
      %v1183 = vld [vmem:[#allocation2 + $0x2b8] sm:$0xff]
      %v1184 = vld [vmem:[#allocation2 + $0x2c0] sm:$0xff]
      %v1185 = vld [vmem:[#allocation2 + $0x2c8] sm:$0xff]
      %v1186 = vld [vmem:[#allocation2 + $0x2d0] sm:$0xff]
      %v1187 = vld [vmem:[#allocation2 + $0x2d8] sm:$0xff]
      %v1188 = vld [vmem:[#allocation2 + $0x2e0] sm:$0xff]
      %v1189 = vld [vmem:[#allocation2 + $0x2e8] sm:$0xff]
      %v1190 = vld [vmem:[#allocation2 + $0x2f0] sm:$0xff]
      %v1191 = vld [vmem:[#allocation2 + $0x2f8] sm:$0xff]
      %v1192 = vld [vmem:[#allocation2 + $0x300] sm:$0xff]
      %v1193 = vld [vmem:[#allocation2 + $0x308] sm:$0xff]
      %v1194 = vld [vmem:[#allocation2 + $0x310] sm:$0xff]
      %v1195 = vld [vmem:[#allocation2 + $0x318] sm:$0xff]
      %v1196 = vld [vmem:[#allocation2 + $0x320] sm:$0xff]
      %v1197 = vld [vmem:[#allocation2 + $0x328] sm:$0xff]
      %v1198 = vld [vmem:[#allocation2 + $0x330] sm:$0xff]
      %v1199 = vld [vmem:[#allocation2 + $0x338] sm:$0xff]
      %v1200 = vld [vmem:[#allocation2 + $0x340] sm:$0xff]
      %v1201 = vld [vmem:[#allocation2 + $0x348] sm:$0xff]
      %v1202 = vld [vmem:[#allocation2 + $0x350] sm:$0xff]
      %v1203 = vld [vmem:[#allocation2 + $0x358] sm:$0xff]
      %v1204 = vld [vmem:[#allocation2 + $0x360] sm:$0xff]
      %v1205 = vld [vmem:[#allocation2 + $0x368] sm:$0xff]
      %v1206 = vld [vmem:[#allocation2 + $0x370] sm:$0xff]
      %v1207 = vld [vmem:[#allocation2 + $0x378] sm:$0xff]
      %v1208 = vld [vmem:[#allocation2 + $0x380] sm:$0xff]
      %v1209 = vld [vmem:[#allocation2 + $0x388] sm:$0xff]
      %v1210 = vld [vmem:[#allocation2 + $0x390] sm:$0xff]
      %v1211 = vld [vmem:[#allocation2 + $0x398] sm:$0xff]
      %v1212 = vld [vmem:[#allocation2 + $0x3a0] sm:$0xff]
      %v1213 = vld [vmem:[#allocation2 + $0x3a8] sm:$0xff]
      %v1214 = vld [vmem:[#allocation2 + $0x3b0] sm:$0xff]
      %v1215 = vld [vmem:[#allocation2 + $0x3b8] sm:$0xff]
      %v1216 = vld [vmem:[#allocation2 + $0x3c0] sm:$0xff]
      %v1217 = vld [vmem:[#allocation2 + $0x3c8] sm:$0xff]
      %v1218 = vld [vmem:[#allocation2 + $0x3d0] sm:$0xff]
      %v1219 = vld [vmem:[#allocation2 + $0x3d8] sm:$0xff]
      %v1220 = vld [vmem:[#allocation2 + $0x3e0] sm:$0xff]
      %v1221 = vld [vmem:[#allocation2 + $0x3e8] sm:$0xff]
      %v1222 = vld [vmem:[#allocation2 + $0x3f0] sm:$0xff]
      %v1223 = vld [vmem:[#allocation2 + $0x3f8] sm:$0xff]
      %v1224 = vld [vmem:[%s2] sm:$0xff]
      %1226 = vset.pattern.permute.xlu0 0
      %1227 = vperm.xlu0 %1226, %v1224
      %v1228 = vpop.permute.xlu0 %1227
      %1230 = vmatprep.subr.mxu0 %v1097
      %1231 = vmatpush1.msra.mxu0 %v1096
      %1232 = vmatprep.subr.mxu0 %v1101
      %1233 = vmatpush1.msra.mxu0 %v1100
      %1234 = vmatprep.subr.mxu0 %v1105
      %1235 = vmatpush1.msra.mxu0 %v1104
      %1236 = vmatprep.subr.mxu0 %v1109
      %1237 = vmatpush1.msra.mxu0 %v1108
      %1238 = vmatprep.subr.mxu0 %v1113
      %1239 = vmatpush1.msra.mxu0 %v1112
      %1240 = vmatprep.subr.mxu0 %v1117
      %1241 = vmatpush1.msra.mxu0 %v1116
      %1242 = vmatprep.subr.mxu0 %v1121
      %1243 = vmatpush1.msra.mxu0 %v1120
      %1244 = vmatprep.subr.mxu0 %v1125
      %1245 = vmatpush1.msra.mxu0 %v1124
      %1246 = vmatprep.subr.mxu0 %v1129
      %1247 = vmatpush1.msra.mxu0 %v1128
      %1248 = vmatprep.subr.mxu0 %v1133
      %1249 = vmatpush1.msra.mxu0 %v1132
      %1250 = vmatprep.subr.mxu0 %v1137
      %1251 = vmatpush1.msra.mxu0 %v1136
      %1252 = vmatprep.subr.mxu0 %v1141
      %1253 = vmatpush1.msra.mxu0 %v1140
      %1254 = vmatprep.subr.mxu0 %v1145
      %1255 = vmatpush1.msra.mxu0 %v1144
      %1256 = vmatprep.subr.mxu0 %v1149
      %1257 = vmatpush1.msra.mxu0 %v1148
      %1258 = vmatprep.subr.mxu0 %v1153
      %1259 = vmatpush1.msra.mxu0 %v1152
      %1260 = vmatprep.subr.mxu0 %v1157
      %1261 = vmatpush1.msra.mxu0 %v1156
      %1262 = vmatprep.subr.mxu0 %v1161
      %1263 = vmatpush1.msra.mxu0 %v1160
      %1264 = vmatprep.subr.mxu0 %v1165
      %1265 = vmatpush1.msra.mxu0 %v1164
      %1266 = vmatprep.subr.mxu0 %v1169
      %1267 = vmatpush1.msra.mxu0 %v1168
      %1268 = vmatprep.subr.mxu0 %v1173
      %1269 = vmatpush1.msra.mxu0 %v1172
      %1270 = vmatprep.subr.mxu0 %v1177
      %1271 = vmatpush1.msra.mxu0 %v1176
      %1272 = vmatprep.subr.mxu0 %v1181
      %1273 = vmatpush1.msra.mxu0 %v1180
      %1274 = vmatprep.subr.mxu0 %v1185
      %1275 = vmatpush1.msra.mxu0 %v1184
      %1276 = vmatprep.subr.mxu0 %v1189
      %1277 = vmatpush1.msra.mxu0 %v1188
      %1278 = vmatprep.subr.mxu0 %v1193
      %1279 = vmatpush1.msra.mxu0 %v1192
      %1280 = vmatprep.subr.mxu0 %v1197
      %1281 = vmatpush1.msra.mxu0 %v1196
      %1282 = vmatprep.subr.mxu0 %v1201
      %1283 = vmatpush1.msra.mxu0 %v1200
      %1284 = vmatprep.subr.mxu0 %v1205
      %1285 = vmatpush1.msra.mxu0 %v1204
      %1286 = vmatprep.subr.mxu0 %v1209
      %1287 = vmatpush1.msra.mxu0 %v1208
      %1288 = vmatprep.subr.mxu0 %v1213
      %1289 = vmatpush1.msra.mxu0 %v1212
      %1290 = vmatprep.subr.mxu0 %v1217
      %1291 = vmatpush1.msra.mxu0 %v1216
      %1292 = vmatprep.subr.mxu0 %v1221
      %1293 = vmatpush1.msra.mxu0 %v1220
      %1294 = vmatprep.mubr.f32.mxu0 %v1095
      %1295 = vmatmul.mubr.f32.gmra.mrb[0].mxu0 %v1094
      %v1296 = vpop.f32.mrb[0].mxu0
      %v1297 = vadd.f32 %v1228, %v1296
      %v1298 = vpop.f32.mrb[0].mxu0
      %v1299 = vadd.f32 %v1228, %v1298
      %1300 = vdwg.mxu0
      %1301 = vmatprep.subr.mxu0 %v1099
      %1302 = vmatpush1.msra.mxu0 %v1098
      %1303 = vmatprep.subr.mxu0 %v1103
      %1304 = vmatpush1.msra.mxu0 %v1102
      %1305 = vmatprep.subr.mxu0 %v1107
      %1306 = vmatpush1.msra.mxu0 %v1106
      %1307 = vmatprep.subr.mxu0 %v1111
      %1308 = vmatpush1.msra.mxu0 %v1110
      %1309 = vmatprep.subr.mxu0 %v1115
      %1310 = vmatpush1.msra.mxu0 %v1114
      %1311 = vmatprep.subr.mxu0 %v1119
      %1312 = vmatpush1.msra.mxu0 %v1118
      %1313 = vmatprep.subr.mxu0 %v1123
      %1314 = vmatpush1.msra.mxu0 %v1122
      %1315 = vmatprep.subr.mxu0 %v1127
      %1316 = vmatpush1.msra.mxu0 %v1126
      %1317 = vmatprep.subr.mxu0 %v1131
      %1318 = vmatpush1.msra.mxu0 %v1130
      %1319 = vmatprep.subr.mxu0 %v1135
      %1320 = vmatpush1.msra.mxu0 %v1134
      %1321 = vmatprep.subr.mxu0 %v1139
      %1322 = vmatpush1.msra.mxu0 %v1138
      %1323 = vmatprep.subr.mxu0 %v1143
      %1324 = vmatpush1.msra.mxu0 %v1142
      %1325 = vmatprep.subr.mxu0 %v1147
      %1326 = vmatpush1.msra.mxu0 %v1146
      %1327 = vmatprep.subr.mxu0 %v1151
      %1328 = vmatpush1.msra.mxu0 %v1150
      %1329 = vmatprep.subr.mxu0 %v1155
      %1330 = vmatpush1.msra.mxu0 %v1154
      %1331 = vmatprep.subr.mxu0 %v1159
      %1332 = vmatpush1.msra.mxu0 %v1158
      %1333 = vmatprep.subr.mxu0 %v1163
      %1334 = vmatpush1.msra.mxu0 %v1162
      %1335 = vmatprep.subr.mxu0 %v1167
      %1336 = vmatpush1.msra.mxu0 %v1166
      %1337 = vmatprep.subr.mxu0 %v1171
      %1338 = vmatpush1.msra.mxu0 %v1170
      %1339 = vmatprep.subr.mxu0 %v1175
      %1340 = vmatpush1.msra.mxu0 %v1174
      %1341 = vmatprep.subr.mxu0 %v1179
      %1342 = vmatpush1.msra.mxu0 %v1178
      %1343 = vmatprep.subr.mxu0 %v1183
      %1344 = vmatpush1.msra.mxu0 %v1182
      %1345 = vmatprep.subr.mxu0 %v1187
      %1346 = vmatpush1.msra.mxu0 %v1186
      %1347 = vmatprep.subr.mxu0 %v1191
      %1348 = vmatpush1.msra.mxu0 %v1190
      %1349 = vmatprep.subr.mxu0 %v1195
      %1350 = vmatpush1.msra.mxu0 %v1194
      %1351 = vmatprep.subr.mxu0 %v1199
      %1352 = vmatpush1.msra.mxu0 %v1198
      %1353 = vmatprep.subr.mxu0 %v1203
      %1354 = vmatpush1.msra.mxu0 %v1202
      %1355 = vmatprep.subr.mxu0 %v1207
      %1356 = vmatpush1.msra.mxu0 %v1206
      %1357 = vmatprep.subr.mxu0 %v1211
      %1358 = vmatpush1.msra.mxu0 %v1210
      %1359 = vmatprep.subr.mxu0 %v1215
      %1360 = vmatpush1.msra.mxu0 %v1214
      %1361 = vmatprep.subr.mxu0 %v1219
      %1362 = vmatpush1.msra.mxu0 %v1218
      %1363 = vmatprep.subr.mxu0 %v1223
      %1364 = vmatpush1.msra.mxu0 %v1222
      %1365 = vmatprep.mubr.f32.mxu0 %v1095
      %1366 = vmatmul.mubr.f32.gmra.mrb[0].mxu0 %v1094
      %v1367 = vpop.f32.mrb[0].mxu0
      %v1368 = vadd.f32 %v1228, %v1367
      %v1369 = vpop.f32.mrb[0].mxu0
      %v1370 = vadd.f32 %v1228, %v1369
      %1371 = vdwg.mxu0
      %v1372 = vmax.f32 %v1297, 0.0
      %v1373 = vmax.f32 %v1299, 0.0
      %v1374 = vmax.f32 %v1368, 0.0
      %v1375 = vmax.f32 %v1370, 0.0
      %1376 = vst [vmem:[%s206] sm:$0xff] %v1372
      %1377 = vst [vmem:[%s206 + $0x8] sm:$0xff] %v1373
      %1378 = vst [vmem:[%s206 + $0x10] sm:$0xff] %v1374
      %1379 = vst [vmem:[%s206 + $0x18] sm:$0xff] %v1375
      %s1380 = smul.u32 4, %s19
      %p1381 = scmp.lt.s32.totalorder %s18, 1
      %s1382 = scalar_select %p1381, %s18, 1
      %p1383 = scmp.lt.s32.totalorder %s1380, 7
      %s1384 = scalar_select %p1383, %s1380, 7
      %s1385 = smul.addr %s1382, 8
      %s1386 = sadd.s32 %s1384, %s1385
      %s1387 = smul.addr %s1386, 8
      %s1388 = scalar_lea.vmem %s3, %s1387
      // Predicated region
      $region33: #{conv_block_forward.1} parent=31 // pred_check
        %p1389 = pneg %p116
      $region34: #{conv_block_forward.1} parent=31 // pred_check_branch
        %1391 = sbr.rel (%p1389) target = $region36
      $region35: #{conv_block_forward.1} parent=31 // pred_region
        %s1392 = smul.u32 4, %s19
      $region36: #{conv_block_forward.1} parent=31 // pred_fallthru
        _
    $region32: #{conv_block_forward.1} parent=5 // pred_fallthru
      _
    %p1393 = scmp.le.s32.totalorder 2, %s9
    // Predicated region
    $region37: #{conv_block_forward.1} parent=5 // pred_check
      %p1394 = pneg %p1393
    $region38: #{conv_block_forward.1} parent=5 // pred_check_branch
      %1396 = sbr.rel (%p1394) target = $region40
    $region39: #{conv_block_forward.1} parent=5 // pred_region
      %s1397 = ssub.s32 %s9, 2
      // Predicated region
      $region41: #{conv_block_forward.1} parent=39 // pred_check
        %p1398 = pneg %p122
      $region42: #{conv_block_forward.1} parent=39 // pred_check_branch
        %1400 = sbr.rel (%p1398) target = $region44
      $region43: #{conv_block_forward.1} parent=39 // pred_region
        %s1401 = smul.u32 4, %s21
        %p1402 = scmp.lt.s32.totalorder %s20, 1
        %s1403 = scalar_select %p1402, %s20, 1
        %p1404 = scmp.lt.s32.totalorder %s1401, 7
        %s1405 = scalar_select %p1404, %s1401, 7
        %s1406 = smul.addr %s1403, 8
        %s1407 = sadd.s32 %s1405, %s1406
        %s1408 = smul.addr %s1407, 8
        %s1409 = scalar_lea.vmem %s3, %s1408
      $region44: #{conv_block_forward.1} parent=39 // pred_fallthru
        _
    $region40: #{conv_block_forward.1} parent=5 // pred_fallthru
      _
  $region6: #{conv_block_forward.1} parent=0 // loop_footer
    %s13 = sadd.s32 1, %s9
  $region7: #{conv_block_forward.1} parent=0 // loop_footer_branch
    %8 = sbr.rel target = $region3
  $region8: #{conv_block_forward.1} parent=0 // loop_exit
    _

</llo_original>
